<compile_context>
chip_gen: v7x
topology: tpu7x:2x2x1
jax: 0.10.0
libtpu: 0.0.40
codegen_flags: <defaults>
</compile_context>

<pallas_src>
import functools

import jax
import jax.numpy as jnp
from jax import lax
from jax.experimental import pallas as pl
from jax.experimental.pallas import tpu as pltpu

# ----- constants the original module relies on (defined in its source file) -----
AA_TO_INDEX = {aa: i for i, aa in enumerate("ACDEFGHIKLMNPQRSTVWY")}  # 20 amino acids
PEPTIDE_LENGTH = 9
VOCAB_SIZE = len(AA_TO_INDEX) + 1  # 21

_LANE = 128
_SUBLANE = 8


def _round_up(x: int, m: int) -> int:
    return (x + m - 1) // m * m


def _padded_bytes(arr) -> int:
    """Conservative VMEM footprint estimate ((8,128)-padded, 4 B/elem)."""
    shape = arr.shape
    if len(shape) == 0:
        return 4
    if len(shape) == 1:
        return _round_up(shape[0], _LANE) * 4
    lead = 1
    for d in shape[:-2]:
        lead *= d
    return lead * _round_up(shape[-2], _SUBLANE) * _round_up(shape[-1], _LANE) * 4


# --------------------------- Pallas kernel (fused net) ---------------------------
def _make_kernel(peptide_len, hidden_widths, out_dim, out_pad, compute_dtype):
    """Embedding + all Linear(+ReLU) layers fused; one batch tile per grid point."""
    num_mid = len(hidden_widths) - 1

    def kernel(*refs):
        x_ref = refs[0]                      # (TB, L) int32 token ids
        emb_ref = refs[1]                    # (V, E)        compute_dtype
        w1_ref = refs[2]                     # (L, E, H1)    compute_dtype
        mid_refs = refs[3:3 + num_mid]       # (H_i, H_{i+1}) compute_dtype
        wlast_ref = refs[3 + num_mid]        # (1, H_last) f32  or  (H_last, OUT_PAD)
        bias_ref = refs[4 + num_mid]         # (num_layers, BPAD) f32
        o_ref = refs[-1]                     # (TB, OUT_PAD) f32

        tb = x_ref.shape[0]
        vocab = emb_ref.shape[0]
        h1 = hidden_widths[0]

        idx = x_ref[...]
        emb_t = emb_ref[...]
        bias_all = bias_ref[...]

        # Fused embedding gather (one-hot matmul on the MXU) + first Linear layer.
        # The flattened (TB, L*E) activation is never materialized: per peptide
        # position we accumulate emb_p @ W1[p] straight into the layer-1 output.
        pos_iota = lax.broadcasted_iota(jnp.int32, (tb, vocab), 1)  # hoisted (no CSE in loop)
        h = jnp.zeros((tb, h1), jnp.float32)
        for p in range(peptide_len):
            tok = idx[:, p:p + 1]                                   # (TB, 1)
            onehot = (pos_iota == tok).astype(compute_dtype)        # (TB, V)
            emb_p = jnp.dot(onehot, emb_t, preferred_element_type=jnp.float32)  # (TB, E)
            h = h + jnp.dot(emb_p.astype(compute_dtype), w1_ref[p],
                            preferred_element_type=jnp.float32)
        h = jnp.maximum(h + bias_all[0:1, :h1], 0.0)                # f32 epilogue

        # Middle hidden layers: compute_dtype MXU operands, f32 accumulate + f32 bias/ReLU.
        for li in range(num_mid):
            w_out = hidden_widths[li + 1]
            h = jnp.dot(h.astype(compute_dtype), mid_refs[li][...],
                        preferred_element_type=jnp.float32)
            h = jnp.maximum(h + bias_all[li + 1:li + 2, :w_out], 0.0)

        last = num_mid + 1
        if out_dim == 1:
            # N=1 head on the VPU/XLU (broadcast-mul + lane reduce): avoids a
            # 1-useful-column MXU pass and a masked 1-wide store.
            w_row = wlast_ref[...].astype(jnp.float32)              # (1, H_last)
            r = jnp.sum(h * w_row, axis=-1, keepdims=True)          # (TB, 1)
            r = r + bias_all[last:last + 1, 0:1]
            o_ref[...] = jnp.broadcast_to(r, (tb, out_pad))         # lane-dense store
        else:
            r = jnp.dot(h.astype(compute_dtype), wlast_ref[...],
                        preferred_element_type=jnp.float32)
            o_ref[...] = r + bias_all[last:last + 1, :out_pad]

    return kernel


# ------------------------------------ wrapper ------------------------------------
def linear_net_forward(x_idx, emb_table, weights, biases, *,
                       compute_dtype=jnp.bfloat16, batch_tile=512):
    """Forward pass matching LinearNet.forward.

    x_idx:      (B, PEPTIDE_LENGTH) int32 token indices
    emb_table:  (VOCAB_SIZE, emb_dim) f32
    weights[i]: (in_i, out_i) f32   (already transposed from PyTorch's (out, in))
    biases[i]:  (out_i,) f32
    returns:    squeeze of (B, output_dimension)   (same as torch .squeeze())
    """
    batch = x_idx.shape[0]
    peptide_len = x_idx.shape[1]
    vocab = emb_table.shape[0]
    emb_dim = emb_table.shape[1]
    hid = [w.shape[1] for w in weights[:-1]]          # hidden widths
    out_dim = weights[-1].shape[1]
    assert len(hid) >= 1, "expects at least one hidden layer"
    assert weights[0].shape[0] == peptide_len * emb_dim

    num_mid = len(hid) - 1
    out_pad = max(_LANE, _round_up(out_dim, _LANE))
    bpad = max(out_pad, max(_round_up(h, _LANE) for h in hid))

    # ---- batch tiling: pad rows to a multiple of the tile, grid over batch ----
    tb = _round_up(min(batch_tile, _round_up(batch, _SUBLANE)), _SUBLANE)
    b_pad = _round_up(batch, tb)
    x_pad = x_idx.astype(jnp.int32)
    if b_pad != batch:
        x_pad = jnp.pad(x_pad, ((0, b_pad - batch), (0, 0)))  # pad with token 0; sliced off

    # ---- parameter packing: compute_dtype MXU operands, f32 bias/epilogue ----
    emb_c = emb_table.astype(compute_dtype)
    w1_c = weights[0].reshape(peptide_len, emb_dim, hid[0]).astype(compute_dtype)
    mid_ws = [w.astype(compute_dtype) for w in weights[1:-1]]
    if out_dim == 1:
        wlast_c = weights[-1].reshape(1, -1).astype(jnp.float32)   # row vector for VPU reduce
    else:
        wlast_c = jnp.zeros((hid[-1], out_pad), compute_dtype).at[:, :out_dim].set(
            weights[-1].astype(compute_dtype))
    bias_rows = [jnp.zeros((bpad,), jnp.float32).at[:b.shape[0]].set(b.astype(jnp.float32))
                 for b in biases]
    bias_stack = jnp.stack(bias_rows, axis=0)                      # one VMEM buffer, not N

    params = [emb_c, w1_c, *mid_ws, wlast_c, bias_stack]

    in_specs = [pl.BlockSpec((tb, peptide_len), lambda i: (i, 0))]  # batch-tiled token ids
    for p_arr in params:                                            # weights resident across grid
        in_specs.append(pl.BlockSpec(p_arr.shape, lambda i, _n=p_arr.ndim: (0,) * _n))

    # ---- explicit VMEM budget (fits v5e/v6e 128 MiB and v7x 64 MiB / 32 MiB scoped) ----
    param_bytes = sum(_padded_bytes(p) for p in params)
    idx_blk = tb * _round_up(peptide_len, _LANE) * 4
    out_blk = tb * out_pad * 4
    vmem_limit = int(min(32 << 20,
                         max(8 << 20, 4 * (idx_blk + out_blk) + 2 * param_bytes + (4 << 20))))

    # ---- advisory cost estimate for the XLA scheduler ----
    macs_per_row = peptide_len * (vocab * emb_dim + emb_dim * hid[0])
    for li in range(num_mid):
        macs_per_row += hid[li] * hid[li + 1]
    macs_per_row += hid[-1] * out_dim
    cost = pl.CostEstimate(flops=2 * b_pad * macs_per_row, transcendentals=0,
                           bytes_accessed=int(_padded_bytes(x_pad) + b_pad * out_pad * 4
                                              + param_bytes))

    out_full = pl.pallas_call(
        _make_kernel(peptide_len, hid, out_dim, out_pad, compute_dtype),
        grid=(b_pad // tb,),
        out_shape=jax.ShapeDtypeStruct((b_pad, out_pad), jnp.float32),
        in_specs=in_specs,
        out_specs=pl.BlockSpec((tb, out_pad), lambda i: (i, 0)),
        compiler_params=pltpu.CompilerParams(
            dimension_semantics=("parallel",),
            vmem_limit_bytes=vmem_limit),
        cost_estimate=cost,
    )(x_pad, *params)

    out = out_full[:batch, :out_dim]
    return jnp.squeeze(out)  # matches torch's .squeeze()


# ------------------------------ parameter creation ------------------------------
def init_params(key, embedding_dimension, hidden_dims, output_dimension):
    """Deterministic init mimicking PyTorch defaults (Embedding ~ N(0,1), Linear ~ U(+-1/sqrt(in)))."""
    dims = [PEPTIDE_LENGTH * embedding_dimension] + list(hidden_dims) + [output_dimension]
    k_emb, key = jax.random.split(key)
    emb_table = jax.random.normal(k_emb, (VOCAB_SIZE, embedding_dimension), jnp.float32)

    weights, biases = [], []
    for i in range(len(dims) - 1):
        fan_in, fan_out = dims[i], dims[i + 1]
        k_w, k_b, key = jax.random.split(key, 3)
        bound = 1.0 / (fan_in ** 0.5)
        # stored as (in, out): kernel computes h @ W
        w = jax.random.uniform(k_w, (fan_in, fan_out), jnp.float32, -bound, bound)
        bias = jax.random.uniform(k_b, (fan_out,), jnp.float32, -bound, bound)
        weights.append(w)
        biases.append(bias)
    return emb_table, weights, biases


# ------------------------------------ main --------------------------------------
if __name__ == "__main__":
    embedding_dimension = 8
    hidden_dims = [32, 16]
    output_dimension = 1
    batch = 4

    key = jax.random.PRNGKey(0)
    k_x, k_p = jax.random.split(key)
    x_idx = jax.random.randint(k_x, (batch, PEPTIDE_LENGTH), 0, VOCAB_SIZE, dtype=jnp.int32)
    emb_table, weights, biases = init_params(k_p, embedding_dimension, hidden_dims,
                                             output_dimension)

    # Pure-JAX f32 reference.
    h = jnp.take(emb_table, x_idx, axis=0).reshape(batch, -1)
    for i, (w, b) in enumerate(zip(weights, biases)):
        h = h @ w + b
        if i != len(weights) - 1:
            h = jnp.maximum(h, 0.0)
    ref = jnp.squeeze(h)

    # f32 compute path: tight correctness check.
    fwd_f32 = jax.jit(functools.partial(linear_net_forward, compute_dtype=jnp.float32))
    out_f32 = jax.block_until_ready(fwd_f32(x_idx, emb_table, weights, biases))
    assert out_f32.shape == ref.shape, (out_f32.shape, ref.shape)
    assert jnp.allclose(out_f32, ref, atol=1e-4, rtol=1e-4), "f32 kernel mismatch vs reference"

    # bf16 MXU operands (v6e/v7x-native) with f32 accumulation: loose check expected.
    fwd_bf16 = jax.jit(functools.partial(linear_net_forward, compute_dtype=jnp.bfloat16))
    out_bf16 = jax.block_until_ready(fwd_bf16(x_idx, emb_table, weights, biases))
    assert out_bf16.shape == ref.shape, (out_bf16.shape, ref.shape)
    assert jnp.allclose(out_bf16, ref, atol=5e-2, rtol=5e-2), "bf16 kernel mismatch vs reference"

    print("KERNEL_OK")
</pallas_src>

<mosaic_0001>
module attributes {stable_mosaic.version = 11 : i64} {
  func.func @kernel(%arg0: i32, %arg1: memref<8x9xi32, #tpu.memory_space<vmem>>, %arg2: memref<21x8xf32, #tpu.memory_space<vmem>>, %arg3: memref<9x8x32xf32, #tpu.memory_space<vmem>>, %arg4: memref<32x16xf32, #tpu.memory_space<vmem>>, %arg5: memref<1x16xf32, #tpu.memory_space<vmem>>, %arg6: memref<3x128xf32, #tpu.memory_space<vmem>>, %arg7: memref<8x128xf32, #tpu.memory_space<vmem>>) attributes {dimension_semantics = [#tpu.dimension_semantics<parallel>], iteration_bounds = array<i64: 1>, scalar_prefetch = 0 : i64, scratch_operands = 0 : i64, tpu.core_type = #tpu.core_type<tc>, window_params = [{transform_indices = @transform_0, window_bounds = array<i64: 8, 9>}, {pipeline_mode = #tpu.pipeline_mode<synchronous>, transform_indices = @transform_1, window_bounds = array<i64: 21, 8>}, {pipeline_mode = #tpu.pipeline_mode<synchronous>, transform_indices = @transform_2, window_bounds = array<i64: 9, 8, 32>}, {pipeline_mode = #tpu.pipeline_mode<synchronous>, transform_indices = @transform_3, window_bounds = array<i64: 32, 16>}, {pipeline_mode = #tpu.pipeline_mode<synchronous>, transform_indices = @transform_4, window_bounds = array<i64: 1, 16>}, {pipeline_mode = #tpu.pipeline_mode<synchronous>, transform_indices = @transform_5, window_bounds = array<i64: 3, 128>}, {transform_indices = @transform_6, window_bounds = array<i64: 8, 128>}]} {
    %c0 = arith.constant 0 : index
    %c0_0 = arith.constant 0 : index
    %0 = vector.load %arg1[%c0, %c0_0] : memref<8x9xi32, #tpu.memory_space<vmem>>, vector<8x9xi32>
    %c0_1 = arith.constant 0 : index
    %c0_2 = arith.constant 0 : index
    %1 = vector.load %arg2[%c0_1, %c0_2] : memref<21x8xf32, #tpu.memory_space<vmem>>, vector<21x8xf32>
    %c0_3 = arith.constant 0 : index
    %c0_4 = arith.constant 0 : index
    %2 = vector.load %arg6[%c0_3, %c0_4] : memref<3x128xf32, #tpu.memory_space<vmem>>, vector<3x128xf32>
    %3 = tpu.iota {dimensions = array<i32: 1>} : vector<8x21xi32>
    %cst = arith.constant 0.000000e+00 : f32
    %4 = vector.broadcast %cst : f32 to vector<8x32xf32>
    %5 = vector.extract_strided_slice %0 {offsets = [0, 0], sizes = [8, 1], strides = [1, 1]} : vector<8x9xi32> to vector<8x1xi32>
    %6 = vector.broadcast %5 : vector<8x1xi32> to vector<8x21xi32>
    %7 = arith.cmpi eq, %3, %6 : vector<8x21xi32>
    %8 = arith.extui %7 : vector<8x21xi1> to vector<8x21xi32>
    %9 = arith.sitofp %8 : vector<8x21xi32> to vector<8x21xf32>
    %cst_5 = arith.constant dense<0.000000e+00> : vector<8x8xf32>
    %10 = tpu.matmul %9, %1, %cst_5 {dimension_numbers = #tpu.dot_dimension_numbers<[1], [0], [0], [1], [0, 0, 1, 1], [], []>} : vector<8x21xf32>, vector<21x8xf32>, vector<8x8xf32> -> vector<8x8xf32>
    %c0_6 = arith.constant 0 : index
    %c0_7 = arith.constant 0 : index
    %c0_8 = arith.constant 0 : index
    %11 = vector.load %arg3[%c0_6, %c0_7, %c0_8] : memref<9x8x32xf32, #tpu.memory_space<vmem>>, vector<1x8x32xf32>
    %12 = vector.shape_cast %11 : vector<1x8x32xf32> to vector<8x32xf32>
    %cst_9 = arith.constant dense<0.000000e+00> : vector<8x32xf32>
    %13 = tpu.matmul %10, %12, %cst_9 {dimension_numbers = #tpu.dot_dimension_numbers<[1], [0], [0], [1], [0, 0, 1, 1], [], []>} : vector<8x8xf32>, vector<8x32xf32>, vector<8x32xf32> -> vector<8x32xf32>
    %14 = arith.addf %4, %13 : vector<8x32xf32>
    %15 = vector.extract_strided_slice %0 {offsets = [0, 1], sizes = [8, 1], strides = [1, 1]} : vector<8x9xi32> to vector<8x1xi32>
    %16 = vector.broadcast %15 : vector<8x1xi32> to vector<8x21xi32>
    %17 = arith.cmpi eq, %3, %16 : vector<8x21xi32>
    %18 = arith.extui %17 : vector<8x21xi1> to vector<8x21xi32>
    %19 = arith.sitofp %18 : vector<8x21xi32> to vector<8x21xf32>
    %cst_10 = arith.constant dense<0.000000e+00> : vector<8x8xf32>
    %20 = tpu.matmul %19, %1, %cst_10 {dimension_numbers = #tpu.dot_dimension_numbers<[1], [0], [0], [1], [0, 0, 1, 1], [], []>} : vector<8x21xf32>, vector<21x8xf32>, vector<8x8xf32> -> vector<8x8xf32>
    %c1 = arith.constant 1 : index
    %c0_11 = arith.constant 0 : index
    %c0_12 = arith.constant 0 : index
    %21 = vector.load %arg3[%c1, %c0_11, %c0_12] : memref<9x8x32xf32, #tpu.memory_space<vmem>>, vector<1x8x32xf32>
    %22 = vector.shape_cast %21 : vector<1x8x32xf32> to vector<8x32xf32>
    %cst_13 = arith.constant dense<0.000000e+00> : vector<8x32xf32>
    %23 = tpu.matmul %20, %22, %cst_13 {dimension_numbers = #tpu.dot_dimension_numbers<[1], [0], [0], [1], [0, 0, 1, 1], [], []>} : vector<8x8xf32>, vector<8x32xf32>, vector<8x32xf32> -> vector<8x32xf32>
    %24 = arith.addf %14, %23 : vector<8x32xf32>
    %25 = vector.extract_strided_slice %0 {offsets = [0, 2], sizes = [8, 1], strides = [1, 1]} : vector<8x9xi32> to vector<8x1xi32>
    %26 = vector.broadcast %25 : vector<8x1xi32> to vector<8x21xi32>
    %27 = arith.cmpi eq, %3, %26 : vector<8x21xi32>
    %28 = arith.extui %27 : vector<8x21xi1> to vector<8x21xi32>
    %29 = arith.sitofp %28 : vector<8x21xi32> to vector<8x21xf32>
    %cst_14 = arith.constant dense<0.000000e+00> : vector<8x8xf32>
    %30 = tpu.matmul %29, %1, %cst_14 {dimension_numbers = #tpu.dot_dimension_numbers<[1], [0], [0], [1], [0, 0, 1, 1], [], []>} : vector<8x21xf32>, vector<21x8xf32>, vector<8x8xf32> -> vector<8x8xf32>
    %c2 = arith.constant 2 : index
    %c0_15 = arith.constant 0 : index
    %c0_16 = arith.constant 0 : index
    %31 = vector.load %arg3[%c2, %c0_15, %c0_16] : memref<9x8x32xf32, #tpu.memory_space<vmem>>, vector<1x8x32xf32>
    %32 = vector.shape_cast %31 : vector<1x8x32xf32> to vector<8x32xf32>
    %cst_17 = arith.constant dense<0.000000e+00> : vector<8x32xf32>
    %33 = tpu.matmul %30, %32, %cst_17 {dimension_numbers = #tpu.dot_dimension_numbers<[1], [0], [0], [1], [0, 0, 1, 1], [], []>} : vector<8x8xf32>, vector<8x32xf32>, vector<8x32xf32> -> vector<8x32xf32>
    %34 = arith.addf %24, %33 : vector<8x32xf32>
    %35 = vector.extract_strided_slice %0 {offsets = [0, 3], sizes = [8, 1], strides = [1, 1]} : vector<8x9xi32> to vector<8x1xi32>
    %36 = vector.broadcast %35 : vector<8x1xi32> to vector<8x21xi32>
    %37 = arith.cmpi eq, %3, %36 : vector<8x21xi32>
    %38 = arith.extui %37 : vector<8x21xi1> to vector<8x21xi32>
    %39 = arith.sitofp %38 : vector<8x21xi32> to vector<8x21xf32>
    %cst_18 = arith.constant dense<0.000000e+00> : vector<8x8xf32>
    %40 = tpu.matmul %39, %1, %cst_18 {dimension_numbers = #tpu.dot_dimension_numbers<[1], [0], [0], [1], [0, 0, 1, 1], [], []>} : vector<8x21xf32>, vector<21x8xf32>, vector<8x8xf32> -> vector<8x8xf32>
    %c3 = arith.constant 3 : index
    %c0_19 = arith.constant 0 : index
    %c0_20 = arith.constant 0 : index
    %41 = vector.load %arg3[%c3, %c0_19, %c0_20] : memref<9x8x32xf32, #tpu.memory_space<vmem>>, vector<1x8x32xf32>
    %42 = vector.shape_cast %41 : vector<1x8x32xf32> to vector<8x32xf32>
    %cst_21 = arith.constant dense<0.000000e+00> : vector<8x32xf32>
    %43 = tpu.matmul %40, %42, %cst_21 {dimension_numbers = #tpu.dot_dimension_numbers<[1], [0], [0], [1], [0, 0, 1, 1], [], []>} : vector<8x8xf32>, vector<8x32xf32>, vector<8x32xf32> -> vector<8x32xf32>
    %44 = arith.addf %34, %43 : vector<8x32xf32>
    %45 = vector.extract_strided_slice %0 {offsets = [0, 4], sizes = [8, 1], strides = [1, 1]} : vector<8x9xi32> to vector<8x1xi32>
    %46 = vector.broadcast %45 : vector<8x1xi32> to vector<8x21xi32>
    %47 = arith.cmpi eq, %3, %46 : vector<8x21xi32>
    %48 = arith.extui %47 : vector<8x21xi1> to vector<8x21xi32>
    %49 = arith.sitofp %48 : vector<8x21xi32> to vector<8x21xf32>
    %cst_22 = arith.constant dense<0.000000e+00> : vector<8x8xf32>
    %50 = tpu.matmul %49, %1, %cst_22 {dimension_numbers = #tpu.dot_dimension_numbers<[1], [0], [0], [1], [0, 0, 1, 1], [], []>} : vector<8x21xf32>, vector<21x8xf32>, vector<8x8xf32> -> vector<8x8xf32>
    %c4 = arith.constant 4 : index
    %c0_23 = arith.constant 0 : index
    %c0_24 = arith.constant 0 : index
    %51 = vector.load %arg3[%c4, %c0_23, %c0_24] : memref<9x8x32xf32, #tpu.memory_space<vmem>>, vector<1x8x32xf32>
    %52 = vector.shape_cast %51 : vector<1x8x32xf32> to vector<8x32xf32>
    %cst_25 = arith.constant dense<0.000000e+00> : vector<8x32xf32>
    %53 = tpu.matmul %50, %52, %cst_25 {dimension_numbers = #tpu.dot_dimension_numbers<[1], [0], [0], [1], [0, 0, 1, 1], [], []>} : vector<8x8xf32>, vector<8x32xf32>, vector<8x32xf32> -> vector<8x32xf32>
    %54 = arith.addf %44, %53 : vector<8x32xf32>
    %55 = vector.extract_strided_slice %0 {offsets = [0, 5], sizes = [8, 1], strides = [1, 1]} : vector<8x9xi32> to vector<8x1xi32>
    %56 = vector.broadcast %55 : vector<8x1xi32> to vector<8x21xi32>
    %57 = arith.cmpi eq, %3, %56 : vector<8x21xi32>
    %58 = arith.extui %57 : vector<8x21xi1> to vector<8x21xi32>
    %59 = arith.sitofp %58 : vector<8x21xi32> to vector<8x21xf32>
    %cst_26 = arith.constant dense<0.000000e+00> : vector<8x8xf32>
    %60 = tpu.matmul %59, %1, %cst_26 {dimension_numbers = #tpu.dot_dimension_numbers<[1], [0], [0], [1], [0, 0, 1, 1], [], []>} : vector<8x21xf32>, vector<21x8xf32>, vector<8x8xf32> -> vector<8x8xf32>
    %c5 = arith.constant 5 : index
    %c0_27 = arith.constant 0 : index
    %c0_28 = arith.constant 0 : index
    %61 = vector.load %arg3[%c5, %c0_27, %c0_28] : memref<9x8x32xf32, #tpu.memory_space<vmem>>, vector<1x8x32xf32>
    %62 = vector.shape_cast %61 : vector<1x8x32xf32> to vector<8x32xf32>
    %cst_29 = arith.constant dense<0.000000e+00> : vector<8x32xf32>
    %63 = tpu.matmul %60, %62, %cst_29 {dimension_numbers = #tpu.dot_dimension_numbers<[1], [0], [0], [1], [0, 0, 1, 1], [], []>} : vector<8x8xf32>, vector<8x32xf32>, vector<8x32xf32> -> vector<8x32xf32>
    %64 = arith.addf %54, %63 : vector<8x32xf32>
    %65 = vector.extract_strided_slice %0 {offsets = [0, 6], sizes = [8, 1], strides = [1, 1]} : vector<8x9xi32> to vector<8x1xi32>
    %66 = vector.broadcast %65 : vector<8x1xi32> to vector<8x21xi32>
    %67 = arith.cmpi eq, %3, %66 : vector<8x21xi32>
    %68 = arith.extui %67 : vector<8x21xi1> to vector<8x21xi32>
    %69 = arith.sitofp %68 : vector<8x21xi32> to vector<8x21xf32>
    %cst_30 = arith.constant dense<0.000000e+00> : vector<8x8xf32>
    %70 = tpu.matmul %69, %1, %cst_30 {dimension_numbers = #tpu.dot_dimension_numbers<[1], [0], [0], [1], [0, 0, 1, 1], [], []>} : vector<8x21xf32>, vector<21x8xf32>, vector<8x8xf32> -> vector<8x8xf32>
    %c6 = arith.constant 6 : index
    %c0_31 = arith.constant 0 : index
    %c0_32 = arith.constant 0 : index
    %71 = vector.load %arg3[%c6, %c0_31, %c0_32] : memref<9x8x32xf32, #tpu.memory_space<vmem>>, vector<1x8x32xf32>
    %72 = vector.shape_cast %71 : vector<1x8x32xf32> to vector<8x32xf32>
    %cst_33 = arith.constant dense<0.000000e+00> : vector<8x32xf32>
    %73 = tpu.matmul %70, %72, %cst_33 {dimension_numbers = #tpu.dot_dimension_numbers<[1], [0], [0], [1], [0, 0, 1, 1], [], []>} : vector<8x8xf32>, vector<8x32xf32>, vector<8x32xf32> -> vector<8x32xf32>
    %74 = arith.addf %64, %73 : vector<8x32xf32>
    %75 = vector.extract_strided_slice %0 {offsets = [0, 7], sizes = [8, 1], strides = [1, 1]} : vector<8x9xi32> to vector<8x1xi32>
    %76 = vector.broadcast %75 : vector<8x1xi32> to vector<8x21xi32>
    %77 = arith.cmpi eq, %3, %76 : vector<8x21xi32>
    %78 = arith.extui %77 : vector<8x21xi1> to vector<8x21xi32>
    %79 = arith.sitofp %78 : vector<8x21xi32> to vector<8x21xf32>
    %cst_34 = arith.constant dense<0.000000e+00> : vector<8x8xf32>
    %80 = tpu.matmul %79, %1, %cst_34 {dimension_numbers = #tpu.dot_dimension_numbers<[1], [0], [0], [1], [0, 0, 1, 1], [], []>} : vector<8x21xf32>, vector<21x8xf32>, vector<8x8xf32> -> vector<8x8xf32>
    %c7 = arith.constant 7 : index
    %c0_35 = arith.constant 0 : index
    %c0_36 = arith.constant 0 : index
    %81 = vector.load %arg3[%c7, %c0_35, %c0_36] : memref<9x8x32xf32, #tpu.memory_space<vmem>>, vector<1x8x32xf32>
    %82 = vector.shape_cast %81 : vector<1x8x32xf32> to vector<8x32xf32>
    %cst_37 = arith.constant dense<0.000000e+00> : vector<8x32xf32>
    %83 = tpu.matmul %80, %82, %cst_37 {dimension_numbers = #tpu.dot_dimension_numbers<[1], [0], [0], [1], [0, 0, 1, 1], [], []>} : vector<8x8xf32>, vector<8x32xf32>, vector<8x32xf32> -> vector<8x32xf32>
    %84 = arith.addf %74, %83 : vector<8x32xf32>
    %85 = vector.extract_strided_slice %0 {offsets = [0, 8], sizes = [8, 1], strides = [1, 1]} : vector<8x9xi32> to vector<8x1xi32>
    %86 = vector.broadcast %85 : vector<8x1xi32> to vector<8x21xi32>
    %87 = arith.cmpi eq, %3, %86 : vector<8x21xi32>
    %88 = arith.extui %87 : vector<8x21xi1> to vector<8x21xi32>
    %89 = arith.sitofp %88 : vector<8x21xi32> to vector<8x21xf32>
    %cst_38 = arith.constant dense<0.000000e+00> : vector<8x8xf32>
    %90 = tpu.matmul %89, %1, %cst_38 {dimension_numbers = #tpu.dot_dimension_numbers<[1], [0], [0], [1], [0, 0, 1, 1], [], []>} : vector<8x21xf32>, vector<21x8xf32>, vector<8x8xf32> -> vector<8x8xf32>
    %c8 = arith.constant 8 : index
    %c0_39 = arith.constant 0 : index
    %c0_40 = arith.constant 0 : index
    %91 = vector.load %arg3[%c8, %c0_39, %c0_40] : memref<9x8x32xf32, #tpu.memory_space<vmem>>, vector<1x8x32xf32>
    %92 = vector.shape_cast %91 : vector<1x8x32xf32> to vector<8x32xf32>
    %cst_41 = arith.constant dense<0.000000e+00> : vector<8x32xf32>
    %93 = tpu.matmul %90, %92, %cst_41 {dimension_numbers = #tpu.dot_dimension_numbers<[1], [0], [0], [1], [0, 0, 1, 1], [], []>} : vector<8x8xf32>, vector<8x32xf32>, vector<8x32xf32> -> vector<8x32xf32>
    %94 = arith.addf %84, %93 : vector<8x32xf32>
    %95 = vector.extract_strided_slice %2 {offsets = [0, 0], sizes = [1, 32], strides = [1, 1]} : vector<3x128xf32> to vector<1x32xf32>
    %96 = vector.broadcast %95 : vector<1x32xf32> to vector<8x32xf32>
    %97 = arith.addf %94, %96 : vector<8x32xf32>
    %cst_42 = arith.constant 0.000000e+00 : f32
    %98 = vector.broadcast %cst_42 : f32 to vector<8x32xf32>
    %99 = arith.maximumf %97, %98 : vector<8x32xf32>
    %c0_43 = arith.constant 0 : index
    %c0_44 = arith.constant 0 : index
    %100 = vector.load %arg4[%c0_43, %c0_44] : memref<32x16xf32, #tpu.memory_space<vmem>>, vector<32x16xf32>
    %cst_45 = arith.constant dense<0.000000e+00> : vector<8x16xf32>
    %101 = tpu.matmul %99, %100, %cst_45 {dimension_numbers = #tpu.dot_dimension_numbers<[1], [0], [0], [1], [0, 0, 1, 1], [], []>} : vector<8x32xf32>, vector<32x16xf32>, vector<8x16xf32> -> vector<8x16xf32>
    %102 = vector.extract_strided_slice %2 {offsets = [1, 0], sizes = [1, 16], strides = [1, 1]} : vector<3x128xf32> to vector<1x16xf32>
    %103 = vector.broadcast %102 : vector<1x16xf32> to vector<8x16xf32>
    %104 = arith.addf %101, %103 : vector<8x16xf32>
    %cst_46 = arith.constant 0.000000e+00 : f32
    %105 = vector.broadcast %cst_46 : f32 to vector<8x16xf32>
    %106 = arith.maximumf %104, %105 : vector<8x16xf32>
    %c0_47 = arith.constant 0 : index
    %c0_48 = arith.constant 0 : index
    %107 = vector.load %arg5[%c0_47, %c0_48] : memref<1x16xf32, #tpu.memory_space<vmem>>, vector<1x16xf32>
    %108 = vector.broadcast %107 : vector<1x16xf32> to vector<8x16xf32>
    %109 = arith.mulf %106, %108 : vector<8x16xf32>
    %cst_49 = arith.constant dense<0.000000e+00> : vector<8xf32>
    %110 = vector.multi_reduction <add>, %109, %cst_49 [1] : vector<8x16xf32> to vector<8xf32>
    %111 = vector.shape_cast %110 : vector<8xf32> to vector<8x1xf32>
    %112 = vector.extract_strided_slice %2 {offsets = [2, 0], sizes = [1, 1], strides = [1, 1]} : vector<3x128xf32> to vector<1x1xf32>
    %113 = vector.broadcast %112 : vector<1x1xf32> to vector<8x1xf32>
    %114 = arith.addf %111, %113 : vector<8x1xf32>
    %115 = vector.shape_cast %114 : vector<8x1xf32> to vector<8x1xf32>
    %116 = vector.broadcast %115 : vector<8x1xf32> to vector<8x128xf32>
    %c0_50 = arith.constant 0 : index
    %c0_51 = arith.constant 0 : index
    %117 = vector.load %arg7[%c0_50, %c0_51] : memref<8x128xf32, #tpu.memory_space<vmem>>, vector<8x128xf32>
    tpu.vector_store %arg7[%c0_50, %c0_51], %116 {strides = array<i32>} : memref<8x128xf32, #tpu.memory_space<vmem>>, vector<8x128xf32>,
    return
  }
  func.func @transform_0(%arg0: i32) -> (i32, i32) {
    %c0_i32 = arith.constant 0 : i32
    %c0_i32_0 = arith.constant 0 : i32
    return %arg0, %c0_i32 : i32, i32
  }
  func.func @transform_1(%arg0: i32) -> (i32, i32) {
    %c0_i32 = arith.constant 0 : i32
    %c0_i32_0 = arith.constant 0 : i32
    %c0_i32_1 = arith.constant 0 : i32
    return %c0_i32, %c0_i32_0 : i32, i32
  }
  func.func @transform_2(%arg0: i32) -> (i32, i32, i32) {
    %c0_i32 = arith.constant 0 : i32
    %c0_i32_0 = arith.constant 0 : i32
    %c0_i32_1 = arith.constant 0 : i32
    %c0_i32_2 = arith.constant 0 : i32
    return %c0_i32, %c0_i32_0, %c0_i32_1 : i32, i32, i32
  }
  func.func @transform_3(%arg0: i32) -> (i32, i32) {
    %c0_i32 = arith.constant 0 : i32
    %c0_i32_0 = arith.constant 0 : i32
    %c0_i32_1 = arith.constant 0 : i32
    return %c0_i32, %c0_i32_0 : i32, i32
  }
  func.func @transform_4(%arg0: i32) -> (i32, i32) {
    %c0_i32 = arith.constant 0 : i32
    %c0_i32_0 = arith.constant 0 : i32
    %c0_i32_1 = arith.constant 0 : i32
    return %c0_i32, %c0_i32_0 : i32, i32
  }
  func.func @transform_5(%arg0: i32) -> (i32, i32) {
    %c0_i32 = arith.constant 0 : i32
    %c0_i32_0 = arith.constant 0 : i32
    %c0_i32_1 = arith.constant 0 : i32
    return %c0_i32, %c0_i32_0 : i32, i32
  }
  func.func @transform_6(%arg0: i32) -> (i32, i32) {
    %c0_i32 = arith.constant 0 : i32
    %c0_i32_0 = arith.constant 0 : i32
    return %arg0, %c0_i32 : i32, i32
  }
}

</mosaic_0001>

<llo_original>
// kernel: linear_net_forward.1
$region0: #{linear_net_forward.1}
  #allocation0 [shape = 'u32[]', space=smem, size = 0x4, offset = 0x4, fixed_abs, tag = 'smem constant byte address 0x4 - core index']
  #allocation1 [shape = 'u32[144,128]{1,0:T(1,128)}', space=vmem, size = 0x12000, scoped, tag = 'internal scratch']
  %s0 = inlined_call_operand.vmem [shape: s32[8,9], index: 0, kind: input, shape index: {}]
  %s1 = inlined_call_operand.vmem [shape: f32[21,8], index: 1, kind: input, shape index: {}]
  %s2 = inlined_call_operand.vmem [shape: f32[9,8,32], index: 2, kind: input, shape index: {}]
  %s3 = inlined_call_operand.vmem [shape: f32[32,16], index: 3, kind: input, shape index: {}]
  %s4 = inlined_call_operand.vmem [shape: f32[1,16], index: 4, kind: input, shape index: {}]
  %s5 = inlined_call_operand.vmem [shape: f32[3,128], index: 5, kind: input, shape index: {}]
  %s6 = inlined_call_operand.vmem [shape: f32[8,128], index: 6, kind: output, shape index: {}]
  %s7 = sld [smem:[#allocation0]]
  $region34: #{linear_net_forward.1} parent=0
    _
  %s9 = ssub.s32 1, %s7
  %s10 = scalar_select 0, %s9, %s7
  // Predicated region
  $region2: #{linear_net_forward.1} parent=0 // pred_check
    _
  $region3: #{linear_net_forward.1} parent=0 // pred_check_branch
    %12 = sbr.rel (0) target = $region5
  $region4: #{linear_net_forward.1} parent=0 // pred_region
    _
  $region5: #{linear_net_forward.1} parent=0 // pred_fallthru
    _
  // Predicated region
  $region6: #{linear_net_forward.1} parent=0 // pred_check
    _
  $region7: #{linear_net_forward.1} parent=0 // pred_check_branch
    %14 = sbr.rel (0) target = $region9
  $region8: #{linear_net_forward.1} parent=0 // pred_region
    _
  $region9: #{linear_net_forward.1} parent=0 // pred_fallthru
    _
  // Predicated region
  $region10: #{linear_net_forward.1} parent=0 // pred_check
    _
  $region11: #{linear_net_forward.1} parent=0 // pred_check_branch
    %16 = sbr.rel (0) target = $region13
  $region12: #{linear_net_forward.1} parent=0 // pred_region
    _
  $region13: #{linear_net_forward.1} parent=0 // pred_fallthru
    _
  // Predicated region
  $region14: #{linear_net_forward.1} parent=0 // pred_check
    _
  $region15: #{linear_net_forward.1} parent=0 // pred_check_branch
    %18 = sbr.rel (0) target = $region17
  $region16: #{linear_net_forward.1} parent=0 // pred_region
    _
  $region17: #{linear_net_forward.1} parent=0 // pred_fallthru
    _
  // Predicated region
  $region18: #{linear_net_forward.1} parent=0 // pred_check
    _
  $region19: #{linear_net_forward.1} parent=0 // pred_check_branch
    %20 = sbr.rel (0) target = $region21
  $region20: #{linear_net_forward.1} parent=0 // pred_region
    _
  $region21: #{linear_net_forward.1} parent=0 // pred_fallthru
    _
  // Predicated region
  $region22: #{linear_net_forward.1} parent=0 // pred_check
    _
  $region23: #{linear_net_forward.1} parent=0 // pred_check_branch
    %22 = sbr.rel (0) target = $region25
  $region24: #{linear_net_forward.1} parent=0 // pred_region
    _
  $region25: #{linear_net_forward.1} parent=0 // pred_fallthru
    _
  %v23 = vld [vmem:[%s0] sm:$0xff]
  %v24 = vld [vmem:[%s1] sm:$0xff]
  %v25 = vld [vmem:[%s1 + $0x8] sm:$0xff]
  %v26 = vld [vmem:[%s1 + $0x10] sm:$0x1f]
  %v27 = vld [vmem:[%s5] sm:$0x7]
  %v28 = vlaneseq
  %v29 = vand.u32 %v28, 127
  %30 = vset.pattern.permute.xlu0 0
  %31 = vperm.xlu0 %30, %v23
  %v32 = vpop.permute.xlu0 %31
  %vm33 = vcmp.eq.s32.totalorder %v29, %v32
  %v34 = vsel %vm33, 1, 0
  %v35 = vcvt.s32.f32 %v34
  %vm36 = vcmask 171008
  %v38 = vsel %vm36, %v35, 0
  %vm40 = vcmask 1044480
  %v42 = vsel %vm40, %v26, 0
  %44 = vmatprep.subr.mxu0 0.0
  %45 = vmatpush1.msra.mxu0 %v24
  %46 = vmatprep.subr.mxu0 0.0
  %47 = vmatpush1.msra.mxu0 %v25
  %48 = vmatprep.subr.mxu0 0.0
  %49 = vmatpush1.msra.mxu0 %v42
  %50 = vmatprep.subr.mxu0 0.0
  %51 = vmatpush1.msra.mxu0 0.0
  %52 = vmatprep.subr.mxu0 0.0
  %53 = vmatpush1.msra.mxu0 0.0
  %54 = vmatprep.subr.mxu0 0.0
  %55 = vmatpush1.msra.mxu0 0.0
  %56 = vmatprep.subr.mxu0 0.0
  %57 = vmatpush1.msra.mxu0 0.0
  %58 = vmatprep.subr.mxu0 0.0
  %59 = vmatpush1.msra.mxu0 0.0
  %60 = vmatprep.subr.mxu0 0.0
  %61 = vmatpush1.msra.mxu0 0.0
  %62 = vmatprep.subr.mxu0 0.0
  %63 = vmatpush1.msra.mxu0 0.0
  %64 = vmatprep.subr.mxu0 0.0
  %65 = vmatpush1.msra.mxu0 0.0
  %66 = vmatprep.subr.mxu0 0.0
  %67 = vmatpush1.msra.mxu0 0.0
  %68 = vmatprep.subr.mxu0 0.0
  %69 = vmatpush1.msra.mxu0 0.0
  %70 = vmatprep.subr.mxu0 0.0
  %71 = vmatpush1.msra.mxu0 0.0
  %72 = vmatprep.subr.mxu0 0.0
  %73 = vmatpush1.msra.mxu0 0.0
  %74 = vmatprep.subr.mxu0 0.0
  %75 = vmatpush1.msra.mxu0 0.0
  %76 = vmatprep.subr.mxu0 0.0
  %77 = vmatpush1.msra.mxu0 0.0
  %78 = vmatprep.subr.mxu0 0.0
  %79 = vmatpush1.msra.mxu0 0.0
  %80 = vmatprep.subr.mxu0 0.0
  %81 = vmatpush1.msra.mxu0 0.0
  %82 = vmatprep.subr.mxu0 0.0
  %83 = vmatpush1.msra.mxu0 0.0
  %84 = vmatprep.subr.mxu0 0.0
  %85 = vmatpush1.msra.mxu0 0.0
  %86 = vmatprep.subr.mxu0 0.0
  %87 = vmatpush1.msra.mxu0 0.0
  %88 = vmatprep.subr.mxu0 0.0
  %89 = vmatpush1.msra.mxu0 0.0
  %90 = vmatprep.subr.mxu0 0.0
  %91 = vmatpush1.msra.mxu0 0.0
  %92 = vmatprep.subr.mxu0 0.0
  %93 = vmatpush1.msra.mxu0 0.0
  %94 = vmatprep.subr.mxu0 0.0
  %95 = vmatpush1.msra.mxu0 0.0
  %96 = vmatprep.subr.mxu0 0.0
  %97 = vmatpush1.msra.mxu0 0.0
  %98 = vmatprep.subr.mxu0 0.0
  %99 = vmatpush1.msra.mxu0 0.0
  %100 = vmatprep.subr.mxu0 0.0
  %101 = vmatpush1.msra.mxu0 0.0
  %102 = vmatprep.subr.mxu0 0.0
  %103 = vmatpush1.msra.mxu0 0.0
  %104 = vmatprep.subr.mxu0 0.0
  %105 = vmatpush1.msra.mxu0 0.0
  %106 = vmatprep.subr.mxu0 0.0
  %107 = vmatpush1.msra.mxu0 0.0
  %108 = vmatprep.mubr.f32.mxu0 0.0
  %109 = vmatmul.mubr.f32.gmra.mrb[0].mxu0 %v38
  %v110 = vpop.f32.mrb[0].mxu0
  %v111 = vadd.f32 0.0, %v110
  %v112 = vpop.f32.mrb[0].mxu0
  %113 = vdwg.mxu0
  %v114 = vld [vmem:[%s2] sm:$0xff]
  %115 = vset.pattern.permute.xlu0 1
  %116 = vperm.xlu0 %115, %v23
  %v117 = vpop.permute.xlu0 %116
  %vm118 = vcmp.eq.s32.totalorder %v29, %v117
  %v119 = vsel %vm118, 1, 0
  %v120 = vcvt.s32.f32 %v119
  %v122 = vsel %vm36, %v120, 0
  %124 = vmatprep.subr.mxu0 0.0
  %125 = vmatpush1.msra.mxu0 %v24
  %126 = vmatprep.subr.mxu0 0.0
  %127 = vmatpush1.msra.mxu0 %v25
  %128 = vmatprep.subr.mxu0 0.0
  %129 = vmatpush1.msra.mxu0 %v42
  %130 = vmatprep.subr.mxu0 0.0
  %131 = vmatpush1.msra.mxu0 0.0
  %132 = vmatprep.subr.mxu0 0.0
  %133 = vmatpush1.msra.mxu0 0.0
  %134 = vmatprep.subr.mxu0 0.0
  %135 = vmatpush1.msra.mxu0 0.0
  %136 = vmatprep.subr.mxu0 0.0
  %137 = vmatpush1.msra.mxu0 0.0
  %138 = vmatprep.subr.mxu0 0.0
  %139 = vmatpush1.msra.mxu0 0.0
  %140 = vmatprep.subr.mxu0 0.0
  %141 = vmatpush1.msra.mxu0 0.0
  %142 = vmatprep.subr.mxu0 0.0
  %143 = vmatpush1.msra.mxu0 0.0
  %144 = vmatprep.subr.mxu0 0.0
  %145 = vmatpush1.msra.mxu0 0.0
  %146 = vmatprep.subr.mxu0 0.0
  %147 = vmatpush1.msra.mxu0 0.0
  %148 = vmatprep.subr.mxu0 0.0
  %149 = vmatpush1.msra.mxu0 0.0
  %150 = vmatprep.subr.mxu0 0.0
  %151 = vmatpush1.msra.mxu0 0.0
  %152 = vmatprep.subr.mxu0 0.0
  %153 = vmatpush1.msra.mxu0 0.0
  %154 = vmatprep.subr.mxu0 0.0
  %155 = vmatpush1.msra.mxu0 0.0
  %156 = vmatprep.subr.mxu0 0.0
  %157 = vmatpush1.msra.mxu0 0.0
  %158 = vmatprep.subr.mxu0 0.0
  %159 = vmatpush1.msra.mxu0 0.0
  %160 = vmatprep.subr.mxu0 0.0
  %161 = vmatpush1.msra.mxu0 0.0
  %162 = vmatprep.subr.mxu0 0.0
  %163 = vmatpush1.msra.mxu0 0.0
  %164 = vmatprep.subr.mxu0 0.0
  %165 = vmatpush1.msra.mxu0 0.0
  %166 = vmatprep.subr.mxu0 0.0
  %167 = vmatpush1.msra.mxu0 0.0
  %168 = vmatprep.subr.mxu0 0.0
  %169 = vmatpush1.msra.mxu0 0.0
  %170 = vmatprep.subr.mxu0 0.0
  %171 = vmatpush1.msra.mxu0 0.0
  %172 = vmatprep.subr.mxu0 0.0
  %173 = vmatpush1.msra.mxu0 0.0
  %174 = vmatprep.subr.mxu0 0.0
  %175 = vmatpush1.msra.mxu0 0.0
  %176 = vmatprep.subr.mxu0 0.0
  %177 = vmatpush1.msra.mxu0 0.0
  %178 = vmatprep.subr.mxu0 0.0
  %179 = vmatpush1.msra.mxu0 0.0
  %180 = vmatprep.subr.mxu0 0.0
  %181 = vmatpush1.msra.mxu0 0.0
  %182 = vmatprep.subr.mxu0 0.0
  %183 = vmatpush1.msra.mxu0 0.0
  %184 = vmatprep.subr.mxu0 0.0
  %185 = vmatpush1.msra.mxu0 0.0
  %186 = vmatprep.subr.mxu0 0.0
  %187 = vmatpush1.msra.mxu0 0.0
  %188 = vmatprep.mubr.f32.mxu0 0.0
  %189 = vmatmul.mubr.f32.gmra.mrb[0].mxu0 %v122
  %v190 = vpop.f32.mrb[0].mxu0
  %v191 = vadd.f32 0.0, %v190
  %v192 = vpop.f32.mrb[0].mxu0
  %193 = vdwg.mxu0
  %s194 = scalar_lea.vmem %s2, 8
  %v195 = vld [vmem:[%s194] sm:$0xff]
  %vm196 = vcmask 64512
  %v198 = vsel %vm196, %v191, 0
  %200 = vmatprep.subr.mxu0 0.0
  %201 = vmatpush1.msra.mxu0 %v195
  %202 = vmatprep.subr.mxu0 0.0
  %203 = vmatpush1.msra.mxu0 0.0
  %204 = vmatprep.subr.mxu0 0.0
  %205 = vmatpush1.msra.mxu0 0.0
  %206 = vmatprep.subr.mxu0 0.0
  %207 = vmatpush1.msra.mxu0 0.0
  %208 = vmatprep.subr.mxu0 0.0
  %209 = vmatpush1.msra.mxu0 0.0
  %210 = vmatprep.subr.mxu0 0.0
  %211 = vmatpush1.msra.mxu0 0.0
  %212 = vmatprep.subr.mxu0 0.0
  %213 = vmatpush1.msra.mxu0 0.0
  %214 = vmatprep.subr.mxu0 0.0
  %215 = vmatpush1.msra.mxu0 0.0
  %216 = vmatprep.subr.mxu0 0.0
  %217 = vmatpush1.msra.mxu0 0.0
  %218 = vmatprep.subr.mxu0 0.0
  %219 = vmatpush1.msra.mxu0 0.0
  %220 = vmatprep.subr.mxu0 0.0
  %221 = vmatpush1.msra.mxu0 0.0
  %222 = vmatprep.subr.mxu0 0.0
  %223 = vmatpush1.msra.mxu0 0.0
  %224 = vmatprep.subr.mxu0 0.0
  %225 = vmatpush1.msra.mxu0 0.0
  %226 = vmatprep.subr.mxu0 0.0
  %227 = vmatpush1.msra.mxu0 0.0
  %228 = vmatprep.subr.mxu0 0.0
  %229 = vmatpush1.msra.mxu0 0.0
  %230 = vmatprep.subr.mxu0 0.0
  %231 = vmatpush1.msra.mxu0 0.0
  %232 = vmatprep.subr.mxu0 0.0
  %233 = vmatpush1.msra.mxu0 0.0
  %234 = vmatprep.subr.mxu0 0.0
  %235 = vmatpush1.msra.mxu0 0.0
  %236 = vmatprep.subr.mxu0 0.0
  %237 = vmatpush1.msra.mxu0 0.0
  %238 = vmatprep.subr.mxu0 0.0
  %239 = vmatpush1.msra.mxu0 0.0
  %240 = vmatprep.subr.mxu0 0.0
  %241 = vmatpush1.msra.mxu0 0.0
  %242 = vmatprep.subr.mxu0 0.0
  %243 = vmatpush1.msra.mxu0 0.0
  %244 = vmatprep.subr.mxu0 0.0
  %245 = vmatpush1.msra.mxu0 0.0
  %246 = vmatprep.subr.mxu0 0.0
  %247 = vmatpush1.msra.mxu0 0.0
  %248 = vmatprep.subr.mxu0 0.0
  %249 = vmatpush1.msra.mxu0 0.0
  %250 = vmatprep.subr.mxu0 0.0
  %251 = vmatpush1.msra.mxu0 0.0
  %252 = vmatprep.subr.mxu0 0.0
  %253 = vmatpush1.msra.mxu0 0.0
  %254 = vmatprep.subr.mxu0 0.0
  %255 = vmatpush1.msra.mxu0 0.0
  %256 = vmatprep.subr.mxu0 0.0
  %257 = vmatpush1.msra.mxu0 0.0
  %258 = vmatprep.subr.mxu0 0.0
  %259 = vmatpush1.msra.mxu0 0.0
  %260 = vmatprep.subr.mxu0 0.0
  %261 = vmatpush1.msra.mxu0 0.0
  %262 = vmatprep.subr.mxu0 0.0
  %263 = vmatpush1.msra.mxu0 0.0
  %264 = vmatprep.mubr.f32.mxu0 0.0
  %265 = vmatmul.mubr.f32.gmra.mrb[0].mxu0 %v198
  %v266 = vpop.f32.mrb[0].mxu0
  %v267 = vadd.f32 0.0, %v266
  %v268 = vpop.f32.mrb[0].mxu0
  %269 = vdwg.mxu0
  %v271 = vsel %vm196, %v111, 0
  %273 = vmatprep.subr.mxu0 0.0
  %274 = vmatpush1.msra.mxu0 %v114
  %275 = vmatprep.subr.mxu0 0.0
  %276 = vmatpush1.msra.mxu0 0.0
  %277 = vmatprep.subr.mxu0 0.0
  %278 = vmatpush1.msra.mxu0 0.0
  %279 = vmatprep.subr.mxu0 0.0
  %280 = vmatpush1.msra.mxu0 0.0
  %281 = vmatprep.subr.mxu0 0.0
  %282 = vmatpush1.msra.mxu0 0.0
  %283 = vmatprep.subr.mxu0 0.0
  %284 = vmatpush1.msra.mxu0 0.0
  %285 = vmatprep.subr.mxu0 0.0
  %286 = vmatpush1.msra.mxu0 0.0
  %287 = vmatprep.subr.mxu0 0.0
  %288 = vmatpush1.msra.mxu0 0.0
  %289 = vmatprep.subr.mxu0 0.0
  %290 = vmatpush1.msra.mxu0 0.0
  %291 = vmatprep.subr.mxu0 0.0
  %292 = vmatpush1.msra.mxu0 0.0
  %293 = vmatprep.subr.mxu0 0.0
  %294 = vmatpush1.msra.mxu0 0.0
  %295 = vmatprep.subr.mxu0 0.0
  %296 = vmatpush1.msra.mxu0 0.0
  %297 = vmatprep.subr.mxu0 0.0
  %298 = vmatpush1.msra.mxu0 0.0
  %299 = vmatprep.subr.mxu0 0.0
  %300 = vmatpush1.msra.mxu0 0.0
  %301 = vmatprep.subr.mxu0 0.0
  %302 = vmatpush1.msra.mxu0 0.0
  %303 = vmatprep.subr.mxu0 0.0
  %304 = vmatpush1.msra.mxu0 0.0
  %305 = vmatprep.subr.mxu0 0.0
  %306 = vmatpush1.msra.mxu0 0.0
  %307 = vmatprep.subr.mxu0 0.0
  %308 = vmatpush1.msra.mxu0 0.0
  %309 = vmatprep.subr.mxu0 0.0
  %310 = vmatpush1.msra.mxu0 0.0
  %311 = vmatprep.subr.mxu0 0.0
  %312 = vmatpush1.msra.mxu0 0.0
  %313 = vmatprep.subr.mxu0 0.0
  %314 = vmatpush1.msra.mxu0 0.0
  %315 = vmatprep.subr.mxu0 0.0
  %316 = vmatpush1.msra.mxu0 0.0
  %317 = vmatprep.subr.mxu0 0.0
  %318 = vmatpush1.msra.mxu0 0.0
  %319 = vmatprep.subr.mxu0 0.0
  %320 = vmatpush1.msra.mxu0 0.0
  %321 = vmatprep.subr.mxu0 0.0
  %322 = vmatpush1.msra.mxu0 0.0
  %323 = vmatprep.subr.mxu0 0.0
  %324 = vmatpush1.msra.mxu0 0.0
  %325 = vmatprep.subr.mxu0 0.0
  %326 = vmatpush1.msra.mxu0 0.0
  %327 = vmatprep.subr.mxu0 0.0
  %328 = vmatpush1.msra.mxu0 0.0
  %329 = vmatprep.subr.mxu0 0.0
  %330 = vmatpush1.msra.mxu0 0.0
  %331 = vmatprep.subr.mxu0 0.0
  %332 = vmatpush1.msra.mxu0 0.0
  %333 = vmatprep.subr.mxu0 0.0
  %334 = vmatpush1.msra.mxu0 0.0
  %335 = vmatprep.subr.mxu0 0.0
  %336 = vmatpush1.msra.mxu0 0.0
  %337 = vmatprep.mubr.f32.mxu0 0.0
  %338 = vmatmul.mubr.f32.gmra.mrb[0].mxu0 %v271
  %v339 = vpop.f32.mrb[0].mxu0
  %v340 = vadd.f32 %v267, %v339
  %v341 = vpop.f32.mrb[0].mxu0
  %342 = vdwg.mxu0
  %343 = vset.pattern.permute.xlu0 2
  %344 = vperm.xlu0 %343, %v23
  %v345 = vpop.permute.xlu0 %344
  %vm346 = vcmp.eq.s32.totalorder %v29, %v345
  %v347 = vsel %vm346, 1, 0
  %v348 = vcvt.s32.f32 %v347
  %v350 = vsel %vm36, %v348, 0
  %352 = vmatprep.subr.mxu0 0.0
  %353 = vmatpush1.msra.mxu0 %v24
  %354 = vmatprep.subr.mxu0 0.0
  %355 = vmatpush1.msra.mxu0 %v25
  %356 = vmatprep.subr.mxu0 0.0
  %357 = vmatpush1.msra.mxu0 %v42
  %358 = vmatprep.subr.mxu0 0.0
  %359 = vmatpush1.msra.mxu0 0.0
  %360 = vmatprep.subr.mxu0 0.0
  %361 = vmatpush1.msra.mxu0 0.0
  %362 = vmatprep.subr.mxu0 0.0
  %363 = vmatpush1.msra.mxu0 0.0
  %364 = vmatprep.subr.mxu0 0.0
  %365 = vmatpush1.msra.mxu0 0.0
  %366 = vmatprep.subr.mxu0 0.0
  %367 = vmatpush1.msra.mxu0 0.0
  %368 = vmatprep.subr.mxu0 0.0
  %369 = vmatpush1.msra.mxu0 0.0
  %370 = vmatprep.subr.mxu0 0.0
  %371 = vmatpush1.msra.mxu0 0.0
  %372 = vmatprep.subr.mxu0 0.0
  %373 = vmatpush1.msra.mxu0 0.0
  %374 = vmatprep.subr.mxu0 0.0
  %375 = vmatpush1.msra.mxu0 0.0
  %376 = vmatprep.subr.mxu0 0.0
  %377 = vmatpush1.msra.mxu0 0.0
  %378 = vmatprep.subr.mxu0 0.0
  %379 = vmatpush1.msra.mxu0 0.0
  %380 = vmatprep.subr.mxu0 0.0
  %381 = vmatpush1.msra.mxu0 0.0
  %382 = vmatprep.subr.mxu0 0.0
  %383 = vmatpush1.msra.mxu0 0.0
  %384 = vmatprep.subr.mxu0 0.0
  %385 = vmatpush1.msra.mxu0 0.0
  %386 = vmatprep.subr.mxu0 0.0
  %387 = vmatpush1.msra.mxu0 0.0
  %388 = vmatprep.subr.mxu0 0.0
  %389 = vmatpush1.msra.mxu0 0.0
  %390 = vmatprep.subr.mxu0 0.0
  %391 = vmatpush1.msra.mxu0 0.0
  %392 = vmatprep.subr.mxu0 0.0
  %393 = vmatpush1.msra.mxu0 0.0
  %394 = vmatprep.subr.mxu0 0.0
  %395 = vmatpush1.msra.mxu0 0.0
  %396 = vmatprep.subr.mxu0 0.0
  %397 = vmatpush1.msra.mxu0 0.0
  %398 = vmatprep.subr.mxu0 0.0
  %399 = vmatpush1.msra.mxu0 0.0
  %400 = vmatprep.subr.mxu0 0.0
  %401 = vmatpush1.msra.mxu0 0.0
  %402 = vmatprep.subr.mxu0 0.0
  %403 = vmatpush1.msra.mxu0 0.0
  %404 = vmatprep.subr.mxu0 0.0
  %405 = vmatpush1.msra.mxu0 0.0
  %406 = vmatprep.subr.mxu0 0.0
  %407 = vmatpush1.msra.mxu0 0.0
  %408 = vmatprep.subr.mxu0 0.0
  %409 = vmatpush1.msra.mxu0 0.0
  %410 = vmatprep.subr.mxu0 0.0
  %411 = vmatpush1.msra.mxu0 0.0
  %412 = vmatprep.subr.mxu0 0.0
  %413 = vmatpush1.msra.mxu0 0.0
  %414 = vmatprep.subr.mxu0 0.0
  %415 = vmatpush1.msra.mxu0 0.0
  %416 = vmatprep.mubr.f32.mxu0 0.0
  %417 = vmatmul.mubr.f32.gmra.mrb[0].mxu0 %v350
  %v418 = vpop.f32.mrb[0].mxu0
  %v419 = vadd.f32 0.0, %v418
  %v420 = vpop.f32.mrb[0].mxu0
  %421 = vdwg.mxu0
  %s422 = scalar_lea.vmem %s2, 16
  %v423 = vld [vmem:[%s422] sm:$0xff]
  %v425 = vsel %vm196, %v419, 0
  %427 = vmatprep.subr.mxu0 0.0
  %428 = vmatpush1.msra.mxu0 %v423
  %429 = vmatprep.subr.mxu0 0.0
  %430 = vmatpush1.msra.mxu0 0.0
  %431 = vmatprep.subr.mxu0 0.0
  %432 = vmatpush1.msra.mxu0 0.0
  %433 = vmatprep.subr.mxu0 0.0
  %434 = vmatpush1.msra.mxu0 0.0
  %435 = vmatprep.subr.mxu0 0.0
  %436 = vmatpush1.msra.mxu0 0.0
  %437 = vmatprep.subr.mxu0 0.0
  %438 = vmatpush1.msra.mxu0 0.0
  %439 = vmatprep.subr.mxu0 0.0
  %440 = vmatpush1.msra.mxu0 0.0
  %441 = vmatprep.subr.mxu0 0.0
  %442 = vmatpush1.msra.mxu0 0.0
  %443 = vmatprep.subr.mxu0 0.0
  %444 = vmatpush1.msra.mxu0 0.0
  %445 = vmatprep.subr.mxu0 0.0
  %446 = vmatpush1.msra.mxu0 0.0
  %447 = vmatprep.subr.mxu0 0.0
  %448 = vmatpush1.msra.mxu0 0.0
  %449 = vmatprep.subr.mxu0 0.0
  %450 = vmatpush1.msra.mxu0 0.0
  %451 = vmatprep.subr.mxu0 0.0
  %452 = vmatpush1.msra.mxu0 0.0
  %453 = vmatprep.subr.mxu0 0.0
  %454 = vmatpush1.msra.mxu0 0.0
  %455 = vmatprep.subr.mxu0 0.0
  %456 = vmatpush1.msra.mxu0 0.0
  %457 = vmatprep.subr.mxu0 0.0
  %458 = vmatpush1.msra.mxu0 0.0
  %459 = vmatprep.subr.mxu0 0.0
  %460 = vmatpush1.msra.mxu0 0.0
  %461 = vmatprep.subr.mxu0 0.0
  %462 = vmatpush1.msra.mxu0 0.0
  %463 = vmatprep.subr.mxu0 0.0
  %464 = vmatpush1.msra.mxu0 0.0
  %465 = vmatprep.subr.mxu0 0.0
  %466 = vmatpush1.msra.mxu0 0.0
  %467 = vmatprep.subr.mxu0 0.0
  %468 = vmatpush1.msra.mxu0 0.0
  %469 = vmatprep.subr.mxu0 0.0
  %470 = vmatpush1.msra.mxu0 0.0
  %471 = vmatprep.subr.mxu0 0.0
  %472 = vmatpush1.msra.mxu0 0.0
  %473 = vmatprep.subr.mxu0 0.0
  %474 = vmatpush1.msra.mxu0 0.0
  %475 = vmatprep.subr.mxu0 0.0
  %476 = vmatpush1.msra.mxu0 0.0
  %477 = vmatprep.subr.mxu0 0.0
  %478 = vmatpush1.msra.mxu0 0.0
  %479 = vmatprep.subr.mxu0 0.0
  %480 = vmatpush1.msra.mxu0 0.0
  %481 = vmatprep.subr.mxu0 0.0
  %482 = vmatpush1.msra.mxu0 0.0
  %483 = vmatprep.subr.mxu0 0.0
  %484 = vmatpush1.msra.mxu0 0.0
  %485 = vmatprep.subr.mxu0 0.0
  %486 = vmatpush1.msra.mxu0 0.0
  %487 = vmatprep.subr.mxu0 0.0
  %488 = vmatpush1.msra.mxu0 0.0
  %489 = vmatprep.subr.mxu0 0.0
  %490 = vmatpush1.msra.mxu0 0.0
  %491 = vmatprep.mubr.f32.mxu0 0.0
  %492 = vmatmul.mubr.f32.gmra.mrb[0].mxu0 %v425
  %v493 = vpop.f32.mrb[0].mxu0
  %v494 = vadd.f32 0.0, %v493
  %v495 = vpop.f32.mrb[0].mxu0
  %496 = vdwg.mxu0
  %v497 = vadd.f32 %v340, %v494
  %498 = vset.pattern.permute.xlu0 3
  %499 = vperm.xlu0 %498, %v23
  %v500 = vpop.permute.xlu0 %499
  %vm501 = vcmp.eq.s32.totalorder %v29, %v500
  %v502 = vsel %vm501, 1, 0
  %v503 = vcvt.s32.f32 %v502
  %v505 = vsel %vm36, %v503, 0
  %507 = vmatprep.subr.mxu0 0.0
  %508 = vmatpush1.msra.mxu0 %v24
  %509 = vmatprep.subr.mxu0 0.0
  %510 = vmatpush1.msra.mxu0 %v25
  %511 = vmatprep.subr.mxu0 0.0
  %512 = vmatpush1.msra.mxu0 %v42
  %513 = vmatprep.subr.mxu0 0.0
  %514 = vmatpush1.msra.mxu0 0.0
  %515 = vmatprep.subr.mxu0 0.0
  %516 = vmatpush1.msra.mxu0 0.0
  %517 = vmatprep.subr.mxu0 0.0
  %518 = vmatpush1.msra.mxu0 0.0
  %519 = vmatprep.subr.mxu0 0.0
  %520 = vmatpush1.msra.mxu0 0.0
  %521 = vmatprep.subr.mxu0 0.0
  %522 = vmatpush1.msra.mxu0 0.0
  %523 = vmatprep.subr.mxu0 0.0
  %524 = vmatpush1.msra.mxu0 0.0
  %525 = vmatprep.subr.mxu0 0.0
  %526 = vmatpush1.msra.mxu0 0.0
  %527 = vmatprep.subr.mxu0 0.0
  %528 = vmatpush1.msra.mxu0 0.0
  %529 = vmatprep.subr.mxu0 0.0
  %530 = vmatpush1.msra.mxu0 0.0
  %531 = vmatprep.subr.mxu0 0.0
  %532 = vmatpush1.msra.mxu0 0.0
  %533 = vmatprep.subr.mxu0 0.0
  %534 = vmatpush1.msra.mxu0 0.0
  %535 = vmatprep.subr.mxu0 0.0
  %536 = vmatpush1.msra.mxu0 0.0
  %537 = vmatprep.subr.mxu0 0.0
  %538 = vmatpush1.msra.mxu0 0.0
  %539 = vmatprep.subr.mxu0 0.0
  %540 = vmatpush1.msra.mxu0 0.0
  %541 = vmatprep.subr.mxu0 0.0
  %542 = vmatpush1.msra.mxu0 0.0
  %543 = vmatprep.subr.mxu0 0.0
  %544 = vmatpush1.msra.mxu0 0.0
  %545 = vmatprep.subr.mxu0 0.0
  %546 = vmatpush1.msra.mxu0 0.0
  %547 = vmatprep.subr.mxu0 0.0
  %548 = vmatpush1.msra.mxu0 0.0
  %549 = vmatprep.subr.mxu0 0.0
  %550 = vmatpush1.msra.mxu0 0.0
  %551 = vmatprep.subr.mxu0 0.0
  %552 = vmatpush1.msra.mxu0 0.0
  %553 = vmatprep.subr.mxu0 0.0
  %554 = vmatpush1.msra.mxu0 0.0
  %555 = vmatprep.subr.mxu0 0.0
  %556 = vmatpush1.msra.mxu0 0.0
  %557 = vmatprep.subr.mxu0 0.0
  %558 = vmatpush1.msra.mxu0 0.0
  %559 = vmatprep.subr.mxu0 0.0
  %560 = vmatpush1.msra.mxu0 0.0
  %561 = vmatprep.subr.mxu0 0.0
  %562 = vmatpush1.msra.mxu0 0.0
  %563 = vmatprep.subr.mxu0 0.0
  %564 = vmatpush1.msra.mxu0 0.0
  %565 = vmatprep.subr.mxu0 0.0
  %566 = vmatpush1.msra.mxu0 0.0
  %567 = vmatprep.subr.mxu0 0.0
  %568 = vmatpush1.msra.mxu0 0.0
  %569 = vmatprep.subr.mxu0 0.0
  %570 = vmatpush1.msra.mxu0 0.0
  %571 = vmatprep.mubr.f32.mxu0 0.0
  %572 = vmatmul.mubr.f32.gmra.mrb[0].mxu0 %v505
  %v573 = vpop.f32.mrb[0].mxu0
  %v574 = vadd.f32 0.0, %v573
  %v575 = vpop.f32.mrb[0].mxu0
  %576 = vdwg.mxu0
  %s577 = scalar_lea.vmem %s2, 24
  %v578 = vld [vmem:[%s577] sm:$0xff]
  %v580 = vsel %vm196, %v574, 0
  %582 = vmatprep.subr.mxu0 0.0
  %583 = vmatpush1.msra.mxu0 %v578
  %584 = vmatprep.subr.mxu0 0.0
  %585 = vmatpush1.msra.mxu0 0.0
  %586 = vmatprep.subr.mxu0 0.0
  %587 = vmatpush1.msra.mxu0 0.0
  %588 = vmatprep.subr.mxu0 0.0
  %589 = vmatpush1.msra.mxu0 0.0
  %590 = vmatprep.subr.mxu0 0.0
  %591 = vmatpush1.msra.mxu0 0.0
  %592 = vmatprep.subr.mxu0 0.0
  %593 = vmatpush1.msra.mxu0 0.0
  %594 = vmatprep.subr.mxu0 0.0
  %595 = vmatpush1.msra.mxu0 0.0
  %596 = vmatprep.subr.mxu0 0.0
  %597 = vmatpush1.msra.mxu0 0.0
  %598 = vmatprep.subr.mxu0 0.0
  %599 = vmatpush1.msra.mxu0 0.0
  %600 = vmatprep.subr.mxu0 0.0
  %601 = vmatpush1.msra.mxu0 0.0
  %602 = vmatprep.subr.mxu0 0.0
  %603 = vmatpush1.msra.mxu0 0.0
  %604 = vmatprep.subr.mxu0 0.0
  %605 = vmatpush1.msra.mxu0 0.0
  %606 = vmatprep.subr.mxu0 0.0
  %607 = vmatpush1.msra.mxu0 0.0
  %608 = vmatprep.subr.mxu0 0.0
  %609 = vmatpush1.msra.mxu0 0.0
  %610 = vmatprep.subr.mxu0 0.0
  %611 = vmatpush1.msra.mxu0 0.0
  %612 = vmatprep.subr.mxu0 0.0
  %613 = vmatpush1.msra.mxu0 0.0
  %614 = vmatprep.subr.mxu0 0.0
  %615 = vmatpush1.msra.mxu0 0.0
  %616 = vmatprep.subr.mxu0 0.0
  %617 = vmatpush1.msra.mxu0 0.0
  %618 = vmatprep.subr.mxu0 0.0
  %619 = vmatpush1.msra.mxu0 0.0
  %620 = vmatprep.subr.mxu0 0.0
  %621 = vmatpush1.msra.mxu0 0.0
  %622 = vmatprep.subr.mxu0 0.0
  %623 = vmatpush1.msra.mxu0 0.0
  %624 = vmatprep.subr.mxu0 0.0
  %625 = vmatpush1.msra.mxu0 0.0
  %626 = vmatprep.subr.mxu0 0.0
  %627 = vmatpush1.msra.mxu0 0.0
  %628 = vmatprep.subr.mxu0 0.0
  %629 = vmatpush1.msra.mxu0 0.0
  %630 = vmatprep.subr.mxu0 0.0
  %631 = vmatpush1.msra.mxu0 0.0
  %632 = vmatprep.subr.mxu0 0.0
  %633 = vmatpush1.msra.mxu0 0.0
  %634 = vmatprep.subr.mxu0 0.0
  %635 = vmatpush1.msra.mxu0 0.0
  %636 = vmatprep.subr.mxu0 0.0
  %637 = vmatpush1.msra.mxu0 0.0
  %638 = vmatprep.subr.mxu0 0.0
  %639 = vmatpush1.msra.mxu0 0.0
  %640 = vmatprep.subr.mxu0 0.0
  %641 = vmatpush1.msra.mxu0 0.0
  %642 = vmatprep.subr.mxu0 0.0
  %643 = vmatpush1.msra.mxu0 0.0
  %644 = vmatprep.subr.mxu0 0.0
  %645 = vmatpush1.msra.mxu0 0.0
  %646 = vmatprep.mubr.f32.mxu0 0.0
  %647 = vmatmul.mubr.f32.gmra.mrb[0].mxu0 %v580
  %v648 = vpop.f32.mrb[0].mxu0
  %v649 = vadd.f32 0.0, %v648
  %v650 = vpop.f32.mrb[0].mxu0
  %651 = vdwg.mxu0
  %v652 = vadd.f32 %v497, %v649
  %653 = vset.pattern.permute.xlu0 4
  %654 = vperm.xlu0 %653, %v23
  %v655 = vpop.permute.xlu0 %654
  %vm656 = vcmp.eq.s32.totalorder %v29, %v655
  %v657 = vsel %vm656, 1, 0
  %v658 = vcvt.s32.f32 %v657
  %v660 = vsel %vm36, %v658, 0
  %662 = vmatprep.subr.mxu0 0.0
  %663 = vmatpush1.msra.mxu0 %v24
  %664 = vmatprep.subr.mxu0 0.0
  %665 = vmatpush1.msra.mxu0 %v25
  %666 = vmatprep.subr.mxu0 0.0
  %667 = vmatpush1.msra.mxu0 %v42
  %668 = vmatprep.subr.mxu0 0.0
  %669 = vmatpush1.msra.mxu0 0.0
  %670 = vmatprep.subr.mxu0 0.0
  %671 = vmatpush1.msra.mxu0 0.0
  %672 = vmatprep.subr.mxu0 0.0
  %673 = vmatpush1.msra.mxu0 0.0
  %674 = vmatprep.subr.mxu0 0.0
  %675 = vmatpush1.msra.mxu0 0.0
  %676 = vmatprep.subr.mxu0 0.0
  %677 = vmatpush1.msra.mxu0 0.0
  %678 = vmatprep.subr.mxu0 0.0
  %679 = vmatpush1.msra.mxu0 0.0
  %680 = vmatprep.subr.mxu0 0.0
  %681 = vmatpush1.msra.mxu0 0.0
  %682 = vmatprep.subr.mxu0 0.0
  %683 = vmatpush1.msra.mxu0 0.0
  %684 = vmatprep.subr.mxu0 0.0
  %685 = vmatpush1.msra.mxu0 0.0
  %686 = vmatprep.subr.mxu0 0.0
  %687 = vmatpush1.msra.mxu0 0.0
  %688 = vmatprep.subr.mxu0 0.0
  %689 = vmatpush1.msra.mxu0 0.0
  %690 = vmatprep.subr.mxu0 0.0
  %691 = vmatpush1.msra.mxu0 0.0
  %692 = vmatprep.subr.mxu0 0.0
  %693 = vmatpush1.msra.mxu0 0.0
  %694 = vmatprep.subr.mxu0 0.0
  %695 = vmatpush1.msra.mxu0 0.0
  %696 = vmatprep.subr.mxu0 0.0
  %697 = vmatpush1.msra.mxu0 0.0
  %698 = vmatprep.subr.mxu0 0.0
  %699 = vmatpush1.msra.mxu0 0.0
  %700 = vmatprep.subr.mxu0 0.0
  %701 = vmatpush1.msra.mxu0 0.0
  %702 = vmatprep.subr.mxu0 0.0
  %703 = vmatpush1.msra.mxu0 0.0
  %704 = vmatprep.subr.mxu0 0.0
  %705 = vmatpush1.msra.mxu0 0.0
  %706 = vmatprep.subr.mxu0 0.0
  %707 = vmatpush1.msra.mxu0 0.0
  %708 = vmatprep.subr.mxu0 0.0
  %709 = vmatpush1.msra.mxu0 0.0
  %710 = vmatprep.subr.mxu0 0.0
  %711 = vmatpush1.msra.mxu0 0.0
  %712 = vmatprep.subr.mxu0 0.0
  %713 = vmatpush1.msra.mxu0 0.0
  %714 = vmatprep.subr.mxu0 0.0
  %715 = vmatpush1.msra.mxu0 0.0
  %716 = vmatprep.subr.mxu0 0.0
  %717 = vmatpush1.msra.mxu0 0.0
  %718 = vmatprep.subr.mxu0 0.0
  %719 = vmatpush1.msra.mxu0 0.0
  %720 = vmatprep.subr.mxu0 0.0
  %721 = vmatpush1.msra.mxu0 0.0
  %722 = vmatprep.subr.mxu0 0.0
  %723 = vmatpush1.msra.mxu0 0.0
  %724 = vmatprep.subr.mxu0 0.0
  %725 = vmatpush1.msra.mxu0 0.0
  %726 = vmatprep.mubr.f32.mxu0 0.0
  %727 = vmatmul.mubr.f32.gmra.mrb[0].mxu0 %v660
  %v728 = vpop.f32.mrb[0].mxu0
  %v729 = vadd.f32 0.0, %v728
  %v730 = vpop.f32.mrb[0].mxu0
  %731 = vdwg.mxu0
  %s732 = scalar_lea.vmem %s2, 32
  %v733 = vld [vmem:[%s732] sm:$0xff]
  %v735 = vsel %vm196, %v729, 0
  %737 = vmatprep.subr.mxu0 0.0
  %738 = vmatpush1.msra.mxu0 %v733
  %739 = vmatprep.subr.mxu0 0.0
  %740 = vmatpush1.msra.mxu0 0.0
  %741 = vmatprep.subr.mxu0 0.0
  %742 = vmatpush1.msra.mxu0 0.0
  %743 = vmatprep.subr.mxu0 0.0
  %744 = vmatpush1.msra.mxu0 0.0
  %745 = vmatprep.subr.mxu0 0.0
  %746 = vmatpush1.msra.mxu0 0.0
  %747 = vmatprep.subr.mxu0 0.0
  %748 = vmatpush1.msra.mxu0 0.0
  %749 = vmatprep.subr.mxu0 0.0
  %750 = vmatpush1.msra.mxu0 0.0
  %751 = vmatprep.subr.mxu0 0.0
  %752 = vmatpush1.msra.mxu0 0.0
  %753 = vmatprep.subr.mxu0 0.0
  %754 = vmatpush1.msra.mxu0 0.0
  %755 = vmatprep.subr.mxu0 0.0
  %756 = vmatpush1.msra.mxu0 0.0
  %757 = vmatprep.subr.mxu0 0.0
  %758 = vmatpush1.msra.mxu0 0.0
  %759 = vmatprep.subr.mxu0 0.0
  %760 = vmatpush1.msra.mxu0 0.0
  %761 = vmatprep.subr.mxu0 0.0
  %762 = vmatpush1.msra.mxu0 0.0
  %763 = vmatprep.subr.mxu0 0.0
  %764 = vmatpush1.msra.mxu0 0.0
  %765 = vmatprep.subr.mxu0 0.0
  %766 = vmatpush1.msra.mxu0 0.0
  %767 = vmatprep.subr.mxu0 0.0
  %768 = vmatpush1.msra.mxu0 0.0
  %769 = vmatprep.subr.mxu0 0.0
  %770 = vmatpush1.msra.mxu0 0.0
  %771 = vmatprep.subr.mxu0 0.0
  %772 = vmatpush1.msra.mxu0 0.0
  %773 = vmatprep.subr.mxu0 0.0
  %774 = vmatpush1.msra.mxu0 0.0
  %775 = vmatprep.subr.mxu0 0.0
  %776 = vmatpush1.msra.mxu0 0.0
  %777 = vmatprep.subr.mxu0 0.0
  %778 = vmatpush1.msra.mxu0 0.0
  %779 = vmatprep.subr.mxu0 0.0
  %780 = vmatpush1.msra.mxu0 0.0
  %781 = vmatprep.subr.mxu0 0.0
  %782 = vmatpush1.msra.mxu0 0.0
  %783 = vmatprep.subr.mxu0 0.0
  %784 = vmatpush1.msra.mxu0 0.0
  %785 = vmatprep.subr.mxu0 0.0
  %786 = vmatpush1.msra.mxu0 0.0
  %787 = vmatprep.subr.mxu0 0.0
  %788 = vmatpush1.msra.mxu0 0.0
  %789 = vmatprep.subr.mxu0 0.0
  %790 = vmatpush1.msra.mxu0 0.0
  %791 = vmatprep.subr.mxu0 0.0
  %792 = vmatpush1.msra.mxu0 0.0
  %793 = vmatprep.subr.mxu0 0.0
  %794 = vmatpush1.msra.mxu0 0.0
  %795 = vmatprep.subr.mxu0 0.0
  %796 = vmatpush1.msra.mxu0 0.0
  %797 = vmatprep.subr.mxu0 0.0
  %798 = vmatpush1.msra.mxu0 0.0
  %799 = vmatprep.subr.mxu0 0.0
  %800 = vmatpush1.msra.mxu0 0.0
  %801 = vmatprep.mubr.f32.mxu0 0.0
  %802 = vmatmul.mubr.f32.gmra.mrb[0].mxu0 %v735
  %v803 = vpop.f32.mrb[0].mxu0
  %v804 = vadd.f32 0.0, %v803
  %v805 = vpop.f32.mrb[0].mxu0
  %806 = vdwg.mxu0
  %v807 = vadd.f32 %v652, %v804
  %808 = vset.pattern.permute.xlu0 5
  %809 = vperm.xlu0 %808, %v23
  %v810 = vpop.permute.xlu0 %809
  %vm811 = vcmp.eq.s32.totalorder %v29, %v810
  %v812 = vsel %vm811, 1, 0
  %v813 = vcvt.s32.f32 %v812
  %v815 = vsel %vm36, %v813, 0
  %817 = vmatprep.subr.mxu0 0.0
  %818 = vmatpush1.msra.mxu0 %v24
  %819 = vmatprep.subr.mxu0 0.0
  %820 = vmatpush1.msra.mxu0 %v25
  %821 = vmatprep.subr.mxu0 0.0
  %822 = vmatpush1.msra.mxu0 %v42
  %823 = vmatprep.subr.mxu0 0.0
  %824 = vmatpush1.msra.mxu0 0.0
  %825 = vmatprep.subr.mxu0 0.0
  %826 = vmatpush1.msra.mxu0 0.0
  %827 = vmatprep.subr.mxu0 0.0
  %828 = vmatpush1.msra.mxu0 0.0
  %829 = vmatprep.subr.mxu0 0.0
  %830 = vmatpush1.msra.mxu0 0.0
  %831 = vmatprep.subr.mxu0 0.0
  %832 = vmatpush1.msra.mxu0 0.0
  %833 = vmatprep.subr.mxu0 0.0
  %834 = vmatpush1.msra.mxu0 0.0
  %835 = vmatprep.subr.mxu0 0.0
  %836 = vmatpush1.msra.mxu0 0.0
  %837 = vmatprep.subr.mxu0 0.0
  %838 = vmatpush1.msra.mxu0 0.0
  %839 = vmatprep.subr.mxu0 0.0
  %840 = vmatpush1.msra.mxu0 0.0
  %841 = vmatprep.subr.mxu0 0.0
  %842 = vmatpush1.msra.mxu0 0.0
  %843 = vmatprep.subr.mxu0 0.0
  %844 = vmatpush1.msra.mxu0 0.0
  %845 = vmatprep.subr.mxu0 0.0
  %846 = vmatpush1.msra.mxu0 0.0
  %847 = vmatprep.subr.mxu0 0.0
  %848 = vmatpush1.msra.mxu0 0.0
  %849 = vmatprep.subr.mxu0 0.0
  %850 = vmatpush1.msra.mxu0 0.0
  %851 = vmatprep.subr.mxu0 0.0
  %852 = vmatpush1.msra.mxu0 0.0
  %853 = vmatprep.subr.mxu0 0.0
  %854 = vmatpush1.msra.mxu0 0.0
  %855 = vmatprep.subr.mxu0 0.0
  %856 = vmatpush1.msra.mxu0 0.0
  %857 = vmatprep.subr.mxu0 0.0
  %858 = vmatpush1.msra.mxu0 0.0
  %859 = vmatprep.subr.mxu0 0.0
  %860 = vmatpush1.msra.mxu0 0.0
  %861 = vmatprep.subr.mxu0 0.0
  %862 = vmatpush1.msra.mxu0 0.0
  %863 = vmatprep.subr.mxu0 0.0
  %864 = vmatpush1.msra.mxu0 0.0
  %865 = vmatprep.subr.mxu0 0.0
  %866 = vmatpush1.msra.mxu0 0.0
  %867 = vmatprep.subr.mxu0 0.0
  %868 = vmatpush1.msra.mxu0 0.0
  %869 = vmatprep.subr.mxu0 0.0
  %870 = vmatpush1.msra.mxu0 0.0
  %871 = vmatprep.subr.mxu0 0.0
  %872 = vmatpush1.msra.mxu0 0.0
  %873 = vmatprep.subr.mxu0 0.0
  %874 = vmatpush1.msra.mxu0 0.0
  %875 = vmatprep.subr.mxu0 0.0
  %876 = vmatpush1.msra.mxu0 0.0
  %877 = vmatprep.subr.mxu0 0.0
  %878 = vmatpush1.msra.mxu0 0.0
  %879 = vmatprep.subr.mxu0 0.0
  %880 = vmatpush1.msra.mxu0 0.0
  %881 = vmatprep.mubr.f32.mxu0 0.0
  %882 = vmatmul.mubr.f32.gmra.mrb[0].mxu0 %v815
  %v883 = vpop.f32.mrb[0].mxu0
  %v884 = vadd.f32 0.0, %v883
  %v885 = vpop.f32.mrb[0].mxu0
  %886 = vdwg.mxu0
  %s887 = scalar_lea.vmem %s2, 40
  %v888 = vld [vmem:[%s887] sm:$0xff]
  %v890 = vsel %vm196, %v884, 0
  %892 = vmatprep.subr.mxu0 0.0
  %893 = vmatpush1.msra.mxu0 %v888
  %894 = vmatprep.subr.mxu0 0.0
  %895 = vmatpush1.msra.mxu0 0.0
  %896 = vmatprep.subr.mxu0 0.0
  %897 = vmatpush1.msra.mxu0 0.0
  %898 = vmatprep.subr.mxu0 0.0
  %899 = vmatpush1.msra.mxu0 0.0
  %900 = vmatprep.subr.mxu0 0.0
  %901 = vmatpush1.msra.mxu0 0.0
  %902 = vmatprep.subr.mxu0 0.0
  %903 = vmatpush1.msra.mxu0 0.0
  %904 = vmatprep.subr.mxu0 0.0
  %905 = vmatpush1.msra.mxu0 0.0
  %906 = vmatprep.subr.mxu0 0.0
  %907 = vmatpush1.msra.mxu0 0.0
  %908 = vmatprep.subr.mxu0 0.0
  %909 = vmatpush1.msra.mxu0 0.0
  %910 = vmatprep.subr.mxu0 0.0
  %911 = vmatpush1.msra.mxu0 0.0
  %912 = vmatprep.subr.mxu0 0.0
  %913 = vmatpush1.msra.mxu0 0.0
  %914 = vmatprep.subr.mxu0 0.0
  %915 = vmatpush1.msra.mxu0 0.0
  %916 = vmatprep.subr.mxu0 0.0
  %917 = vmatpush1.msra.mxu0 0.0
  %918 = vmatprep.subr.mxu0 0.0
  %919 = vmatpush1.msra.mxu0 0.0
  %920 = vmatprep.subr.mxu0 0.0
  %921 = vmatpush1.msra.mxu0 0.0
  %922 = vmatprep.subr.mxu0 0.0
  %923 = vmatpush1.msra.mxu0 0.0
  %924 = vmatprep.subr.mxu0 0.0
  %925 = vmatpush1.msra.mxu0 0.0
  %926 = vmatprep.subr.mxu0 0.0
  %927 = vmatpush1.msra.mxu0 0.0
  %928 = vmatprep.subr.mxu0 0.0
  %929 = vmatpush1.msra.mxu0 0.0
  %930 = vmatprep.subr.mxu0 0.0
  %931 = vmatpush1.msra.mxu0 0.0
  %932 = vmatprep.subr.mxu0 0.0
  %933 = vmatpush1.msra.mxu0 0.0
  %934 = vmatprep.subr.mxu0 0.0
  %935 = vmatpush1.msra.mxu0 0.0
  %936 = vmatprep.subr.mxu0 0.0
  %937 = vmatpush1.msra.mxu0 0.0
  %938 = vmatprep.subr.mxu0 0.0
  %939 = vmatpush1.msra.mxu0 0.0
  %940 = vmatprep.subr.mxu0 0.0
  %941 = vmatpush1.msra.mxu0 0.0
  %942 = vmatprep.subr.mxu0 0.0
  %943 = vmatpush1.msra.mxu0 0.0
  %944 = vmatprep.subr.mxu0 0.0
  %945 = vmatpush1.msra.mxu0 0.0
  %946 = vmatprep.subr.mxu0 0.0
  %947 = vmatpush1.msra.mxu0 0.0
  %948 = vmatprep.subr.mxu0 0.0
  %949 = vmatpush1.msra.mxu0 0.0
  %950 = vmatprep.subr.mxu0 0.0
  %951 = vmatpush1.msra.mxu0 0.0
  %952 = vmatprep.subr.mxu0 0.0
  %953 = vmatpush1.msra.mxu0 0.0
  %954 = vmatprep.subr.mxu0 0.0
  %955 = vmatpush1.msra.mxu0 0.0
  %956 = vmatprep.mubr.f32.mxu0 0.0
  %957 = vmatmul.mubr.f32.gmra.mrb[0].mxu0 %v890
  %v958 = vpop.f32.mrb[0].mxu0
  %v959 = vadd.f32 0.0, %v958
  %v960 = vpop.f32.mrb[0].mxu0
  %961 = vdwg.mxu0
  %v962 = vadd.f32 %v807, %v959
  %963 = vset.pattern.permute.xlu0 6
  %964 = vperm.xlu0 %963, %v23
  %v965 = vpop.permute.xlu0 %964
  %vm966 = vcmp.eq.s32.totalorder %v29, %v965
  %v967 = vsel %vm966, 1, 0
  %v968 = vcvt.s32.f32 %v967
  %v970 = vsel %vm36, %v968, 0
  %972 = vmatprep.subr.mxu0 0.0
  %973 = vmatpush1.msra.mxu0 %v24
  %974 = vmatprep.subr.mxu0 0.0
  %975 = vmatpush1.msra.mxu0 %v25
  %976 = vmatprep.subr.mxu0 0.0
  %977 = vmatpush1.msra.mxu0 %v42
  %978 = vmatprep.subr.mxu0 0.0
  %979 = vmatpush1.msra.mxu0 0.0
  %980 = vmatprep.subr.mxu0 0.0
  %981 = vmatpush1.msra.mxu0 0.0
  %982 = vmatprep.subr.mxu0 0.0
  %983 = vmatpush1.msra.mxu0 0.0
  %984 = vmatprep.subr.mxu0 0.0
  %985 = vmatpush1.msra.mxu0 0.0
  %986 = vmatprep.subr.mxu0 0.0
  %987 = vmatpush1.msra.mxu0 0.0
  %988 = vmatprep.subr.mxu0 0.0
  %989 = vmatpush1.msra.mxu0 0.0
  %990 = vmatprep.subr.mxu0 0.0
  %991 = vmatpush1.msra.mxu0 0.0
  %992 = vmatprep.subr.mxu0 0.0
  %993 = vmatpush1.msra.mxu0 0.0
  %994 = vmatprep.subr.mxu0 0.0
  %995 = vmatpush1.msra.mxu0 0.0
  %996 = vmatprep.subr.mxu0 0.0
  %997 = vmatpush1.msra.mxu0 0.0
  %998 = vmatprep.subr.mxu0 0.0
  %999 = vmatpush1.msra.mxu0 0.0
  %1000 = vmatprep.subr.mxu0 0.0
  %1001 = vmatpush1.msra.mxu0 0.0
  %1002 = vmatprep.subr.mxu0 0.0
  %1003 = vmatpush1.msra.mxu0 0.0
  %1004 = vmatprep.subr.mxu0 0.0
  %1005 = vmatpush1.msra.mxu0 0.0
  %1006 = vmatprep.subr.mxu0 0.0
  %1007 = vmatpush1.msra.mxu0 0.0
  %1008 = vmatprep.subr.mxu0 0.0
  %1009 = vmatpush1.msra.mxu0 0.0
  %1010 = vmatprep.subr.mxu0 0.0
  %1011 = vmatpush1.msra.mxu0 0.0
  %1012 = vmatprep.subr.mxu0 0.0
  %1013 = vmatpush1.msra.mxu0 0.0
  %1014 = vmatprep.subr.mxu0 0.0
  %1015 = vmatpush1.msra.mxu0 0.0
  %1016 = vmatprep.subr.mxu0 0.0
  %1017 = vmatpush1.msra.mxu0 0.0
  %1018 = vmatprep.subr.mxu0 0.0
  %1019 = vmatpush1.msra.mxu0 0.0
  %1020 = vmatprep.subr.mxu0 0.0
  %1021 = vmatpush1.msra.mxu0 0.0
  %1022 = vmatprep.subr.mxu0 0.0
  %1023 = vmatpush1.msra.mxu0 0.0
  %1024 = vmatprep.subr.mxu0 0.0
  %1025 = vmatpush1.msra.mxu0 0.0
  %1026 = vmatprep.subr.mxu0 0.0
  %1027 = vmatpush1.msra.mxu0 0.0
  %1028 = vmatprep.subr.mxu0 0.0
  %1029 = vmatpush1.msra.mxu0 0.0
  %1030 = vmatprep.subr.mxu0 0.0
  %1031 = vmatpush1.msra.mxu0 0.0
  %1032 = vmatprep.subr.mxu0 0.0
  %1033 = vmatpush1.msra.mxu0 0.0
  %1034 = vmatprep.subr.mxu0 0.0
  %1035 = vmatpush1.msra.mxu0 0.0
  %1036 = vmatprep.mubr.f32.mxu0 0.0
  %1037 = vmatmul.mubr.f32.gmra.mrb[0].mxu0 %v970
  %v1038 = vpop.f32.mrb[0].mxu0
  %v1039 = vadd.f32 0.0, %v1038
  %v1040 = vpop.f32.mrb[0].mxu0
  %1041 = vdwg.mxu0
  %s1042 = scalar_lea.vmem %s2, 48
  %v1043 = vld [vmem:[%s1042] sm:$0xff]
  %v1045 = vsel %vm196, %v1039, 0
  %1047 = vmatprep.subr.mxu0 0.0
  %1048 = vmatpush1.msra.mxu0 %v1043
  %1049 = vmatprep.subr.mxu0 0.0
  %1050 = vmatpush1.msra.mxu0 0.0
  %1051 = vmatprep.subr.mxu0 0.0
  %1052 = vmatpush1.msra.mxu0 0.0
  %1053 = vmatprep.subr.mxu0 0.0
  %1054 = vmatpush1.msra.mxu0 0.0
  %1055 = vmatprep.subr.mxu0 0.0
  %1056 = vmatpush1.msra.mxu0 0.0
  %1057 = vmatprep.subr.mxu0 0.0
  %1058 = vmatpush1.msra.mxu0 0.0
  %1059 = vmatprep.subr.mxu0 0.0
  %1060 = vmatpush1.msra.mxu0 0.0
  %1061 = vmatprep.subr.mxu0 0.0
  %1062 = vmatpush1.msra.mxu0 0.0
  %1063 = vmatprep.subr.mxu0 0.0
  %1064 = vmatpush1.msra.mxu0 0.0
  %1065 = vmatprep.subr.mxu0 0.0
  %1066 = vmatpush1.msra.mxu0 0.0
  %1067 = vmatprep.subr.mxu0 0.0
  %1068 = vmatpush1.msra.mxu0 0.0
  %1069 = vmatprep.subr.mxu0 0.0
  %1070 = vmatpush1.msra.mxu0 0.0
  %1071 = vmatprep.subr.mxu0 0.0
  %1072 = vmatpush1.msra.mxu0 0.0
  %1073 = vmatprep.subr.mxu0 0.0
  %1074 = vmatpush1.msra.mxu0 0.0
  %1075 = vmatprep.subr.mxu0 0.0
  %1076 = vmatpush1.msra.mxu0 0.0
  %1077 = vmatprep.subr.mxu0 0.0
  %1078 = vmatpush1.msra.mxu0 0.0
  %1079 = vmatprep.subr.mxu0 0.0
  %1080 = vmatpush1.msra.mxu0 0.0
  %1081 = vmatprep.subr.mxu0 0.0
  %1082 = vmatpush1.msra.mxu0 0.0
  %1083 = vmatprep.subr.mxu0 0.0
  %1084 = vmatpush1.msra.mxu0 0.0
  %1085 = vmatprep.subr.mxu0 0.0
  %1086 = vmatpush1.msra.mxu0 0.0
  %1087 = vmatprep.subr.mxu0 0.0
  %1088 = vmatpush1.msra.mxu0 0.0
  %1089 = vmatprep.subr.mxu0 0.0
  %1090 = vmatpush1.msra.mxu0 0.0
  %1091 = vmatprep.subr.mxu0 0.0
  %1092 = vmatpush1.msra.mxu0 0.0
  %1093 = vmatprep.subr.mxu0 0.0
  %1094 = vmatpush1.msra.mxu0 0.0
  %1095 = vmatprep.subr.mxu0 0.0
  %1096 = vmatpush1.msra.mxu0 0.0
  %1097 = vmatprep.subr.mxu0 0.0
  %1098 = vmatpush1.msra.mxu0 0.0
  %1099 = vmatprep.subr.mxu0 0.0
  %1100 = vmatpush1.msra.mxu0 0.0
  %1101 = vmatprep.subr.mxu0 0.0
  %1102 = vmatpush1.msra.mxu0 0.0
  %1103 = vmatprep.subr.mxu0 0.0
  %1104 = vmatpush1.msra.mxu0 0.0
  %1105 = vmatprep.subr.mxu0 0.0
  %1106 = vmatpush1.msra.mxu0 0.0
  %1107 = vmatprep.subr.mxu0 0.0
  %1108 = vmatpush1.msra.mxu0 0.0
  %1109 = vmatprep.subr.mxu0 0.0
  %1110 = vmatpush1.msra.mxu0 0.0
  %1111 = vmatprep.mubr.f32.mxu0 0.0
  %1112 = vmatmul.mubr.f32.gmra.mrb[0].mxu0 %v1045
  %v1113 = vpop.f32.mrb[0].mxu0
  %v1114 = vadd.f32 0.0, %v1113
  %v1115 = vpop.f32.mrb[0].mxu0
  %1116 = vdwg.mxu0
  %v1117 = vadd.f32 %v962, %v1114
  %1118 = vset.pattern.permute.xlu0 7
  %1119 = vperm.xlu0 %1118, %v23
  %v1120 = vpop.permute.xlu0 %1119
  %vm1121 = vcmp.eq.s32.totalorder %v29, %v1120
  %v1122 = vsel %vm1121, 1, 0
  %v1123 = vcvt.s32.f32 %v1122
  %v1125 = vsel %vm36, %v1123, 0
  %1127 = vmatprep.subr.mxu0 0.0
  %1128 = vmatpush1.msra.mxu0 %v24
  %1129 = vmatprep.subr.mxu0 0.0
  %1130 = vmatpush1.msra.mxu0 %v25
  %1131 = vmatprep.subr.mxu0 0.0
  %1132 = vmatpush1.msra.mxu0 %v42
  %1133 = vmatprep.subr.mxu0 0.0
  %1134 = vmatpush1.msra.mxu0 0.0
  %1135 = vmatprep.subr.mxu0 0.0
  %1136 = vmatpush1.msra.mxu0 0.0
  %1137 = vmatprep.subr.mxu0 0.0
  %1138 = vmatpush1.msra.mxu0 0.0
  %1139 = vmatprep.subr.mxu0 0.0
  %1140 = vmatpush1.msra.mxu0 0.0
  %1141 = vmatprep.subr.mxu0 0.0
  %1142 = vmatpush1.msra.mxu0 0.0
  %1143 = vmatprep.subr.mxu0 0.0
  %1144 = vmatpush1.msra.mxu0 0.0
  %1145 = vmatprep.subr.mxu0 0.0
  %1146 = vmatpush1.msra.mxu0 0.0
  %1147 = vmatprep.subr.mxu0 0.0
  %1148 = vmatpush1.msra.mxu0 0.0
  %1149 = vmatprep.subr.mxu0 0.0
  %1150 = vmatpush1.msra.mxu0 0.0
  %1151 = vmatprep.subr.mxu0 0.0
  %1152 = vmatpush1.msra.mxu0 0.0
  %1153 = vmatprep.subr.mxu0 0.0
  %1154 = vmatpush1.msra.mxu0 0.0
  %1155 = vmatprep.subr.mxu0 0.0
  %1156 = vmatpush1.msra.mxu0 0.0
  %1157 = vmatprep.subr.mxu0 0.0
  %1158 = vmatpush1.msra.mxu0 0.0
  %1159 = vmatprep.subr.mxu0 0.0
  %1160 = vmatpush1.msra.mxu0 0.0
  %1161 = vmatprep.subr.mxu0 0.0
  %1162 = vmatpush1.msra.mxu0 0.0
  %1163 = vmatprep.subr.mxu0 0.0
  %1164 = vmatpush1.msra.mxu0 0.0
  %1165 = vmatprep.subr.mxu0 0.0
  %1166 = vmatpush1.msra.mxu0 0.0
  %1167 = vmatprep.subr.mxu0 0.0
  %1168 = vmatpush1.msra.mxu0 0.0
  %1169 = vmatprep.subr.mxu0 0.0
  %1170 = vmatpush1.msra.mxu0 0.0
  %1171 = vmatprep.subr.mxu0 0.0
  %1172 = vmatpush1.msra.mxu0 0.0
  %1173 = vmatprep.subr.mxu0 0.0
  %1174 = vmatpush1.msra.mxu0 0.0
  %1175 = vmatprep.subr.mxu0 0.0
  %1176 = vmatpush1.msra.mxu0 0.0
  %1177 = vmatprep.subr.mxu0 0.0
  %1178 = vmatpush1.msra.mxu0 0.0
  %1179 = vmatprep.subr.mxu0 0.0
  %1180 = vmatpush1.msra.mxu0 0.0
  %1181 = vmatprep.subr.mxu0 0.0
  %1182 = vmatpush1.msra.mxu0 0.0
  %1183 = vmatprep.subr.mxu0 0.0
  %1184 = vmatpush1.msra.mxu0 0.0
  %1185 = vmatprep.subr.mxu0 0.0
  %1186 = vmatpush1.msra.mxu0 0.0
  %1187 = vmatprep.subr.mxu0 0.0
  %1188 = vmatpush1.msra.mxu0 0.0
  %1189 = vmatprep.subr.mxu0 0.0
  %1190 = vmatpush1.msra.mxu0 0.0
  %1191 = vmatprep.mubr.f32.mxu0 0.0
  %1192 = vmatmul.mubr.f32.gmra.mrb[0].mxu0 %v1125
  %v1193 = vpop.f32.mrb[0].mxu0
  %v1194 = vadd.f32 0.0, %v1193
  %v1195 = vpop.f32.mrb[0].mxu0
  %1196 = vdwg.mxu0
  %s1197 = scalar_lea.vmem %s2, 56
  %v1198 = vld [vmem:[%s1197] sm:$0xff]
  %v1200 = vsel %vm196, %v1194, 0
  %1202 = vmatprep.subr.mxu0 0.0
  %1203 = vmatpush1.msra.mxu0 %v1198
  %1204 = vmatprep.subr.mxu0 0.0
  %1205 = vmatpush1.msra.mxu0 0.0
  %1206 = vmatprep.subr.mxu0 0.0
  %1207 = vmatpush1.msra.mxu0 0.0
  %1208 = vmatprep.subr.mxu0 0.0
  %1209 = vmatpush1.msra.mxu0 0.0
  %1210 = vmatprep.subr.mxu0 0.0
  %1211 = vmatpush1.msra.mxu0 0.0
  %1212 = vmatprep.subr.mxu0 0.0
  %1213 = vmatpush1.msra.mxu0 0.0
  %1214 = vmatprep.subr.mxu0 0.0
  %1215 = vmatpush1.msra.mxu0 0.0
  %1216 = vmatprep.subr.mxu0 0.0
  %1217 = vmatpush1.msra.mxu0 0.0
  %1218 = vmatprep.subr.mxu0 0.0
  %1219 = vmatpush1.msra.mxu0 0.0
  %1220 = vmatprep.subr.mxu0 0.0
  %1221 = vmatpush1.msra.mxu0 0.0
  %1222 = vmatprep.subr.mxu0 0.0
  %1223 = vmatpush1.msra.mxu0 0.0
  %1224 = vmatprep.subr.mxu0 0.0
  %1225 = vmatpush1.msra.mxu0 0.0
  %1226 = vmatprep.subr.mxu0 0.0
  %1227 = vmatpush1.msra.mxu0 0.0
  %1228 = vmatprep.subr.mxu0 0.0
  %1229 = vmatpush1.msra.mxu0 0.0
  %1230 = vmatprep.subr.mxu0 0.0
  %1231 = vmatpush1.msra.mxu0 0.0
  %1232 = vmatprep.subr.mxu0 0.0
  %1233 = vmatpush1.msra.mxu0 0.0
  %1234 = vmatprep.subr.mxu0 0.0
  %1235 = vmatpush1.msra.mxu0 0.0
  %1236 = vmatprep.subr.mxu0 0.0
  %1237 = vmatpush1.msra.mxu0 0.0
  %1238 = vmatprep.subr.mxu0 0.0
  %1239 = vmatpush1.msra.mxu0 0.0
  %1240 = vmatprep.subr.mxu0 0.0
  %1241 = vmatpush1.msra.mxu0 0.0
  %1242 = vmatprep.subr.mxu0 0.0
  %1243 = vmatpush1.msra.mxu0 0.0
  %1244 = vmatprep.subr.mxu0 0.0
  %1245 = vmatpush1.msra.mxu0 0.0
  %1246 = vmatprep.subr.mxu0 0.0
  %1247 = vmatpush1.msra.mxu0 0.0
  %1248 = vmatprep.subr.mxu0 0.0
  %1249 = vmatpush1.msra.mxu0 0.0
  %1250 = vmatprep.subr.mxu0 0.0
  %1251 = vmatpush1.msra.mxu0 0.0
  %1252 = vmatprep.subr.mxu0 0.0
  %1253 = vmatpush1.msra.mxu0 0.0
  %1254 = vmatprep.subr.mxu0 0.0
  %1255 = vmatpush1.msra.mxu0 0.0
  %1256 = vmatprep.subr.mxu0 0.0
  %1257 = vmatpush1.msra.mxu0 0.0
  %1258 = vmatprep.subr.mxu0 0.0
  %1259 = vmatpush1.msra.mxu0 0.0
  %1260 = vmatprep.subr.mxu0 0.0
  %1261 = vmatpush1.msra.mxu0 0.0
  %1262 = vmatprep.subr.mxu0 0.0
  %1263 = vmatpush1.msra.mxu0 0.0
  %1264 = vmatprep.subr.mxu0 0.0
  %1265 = vmatpush1.msra.mxu0 0.0
  %1266 = vmatprep.mubr.f32.mxu0 0.0
  %1267 = vmatmul.mubr.f32.gmra.mrb[0].mxu0 %v1200
  %v1268 = vpop.f32.mrb[0].mxu0
  %v1269 = vadd.f32 0.0, %v1268
  %v1270 = vpop.f32.mrb[0].mxu0
  %1271 = vdwg.mxu0
  %v1272 = vadd.f32 %v1117, %v1269
  %1273 = vset.pattern.permute.xlu0 8
  %1274 = vperm.xlu0 %1273, %v23
  %v1275 = vpop.permute.xlu0 %1274
  %vm1276 = vcmp.eq.s32.totalorder %v29, %v1275
  %v1277 = vsel %vm1276, 1, 0
  %v1278 = vcvt.s32.f32 %v1277
  %v1280 = vsel %vm36, %v1278, 0
  %1282 = vmatprep.subr.mxu0 0.0
  %1283 = vmatpush1.msra.mxu0 %v24
  %1284 = vmatprep.subr.mxu0 0.0
  %1285 = vmatpush1.msra.mxu0 %v25
  %1286 = vmatprep.subr.mxu0 0.0
  %1287 = vmatpush1.msra.mxu0 %v42
  %1288 = vmatprep.subr.mxu0 0.0
  %1289 = vmatpush1.msra.mxu0 0.0
  %1290 = vmatprep.subr.mxu0 0.0
  %1291 = vmatpush1.msra.mxu0 0.0
  %1292 = vmatprep.subr.mxu0 0.0
  %1293 = vmatpush1.msra.mxu0 0.0
  %1294 = vmatprep.subr.mxu0 0.0
  %1295 = vmatpush1.msra.mxu0 0.0
  %1296 = vmatprep.subr.mxu0 0.0
  %1297 = vmatpush1.msra.mxu0 0.0
  %1298 = vmatprep.subr.mxu0 0.0
  %1299 = vmatpush1.msra.mxu0 0.0
  %1300 = vmatprep.subr.mxu0 0.0
  %1301 = vmatpush1.msra.mxu0 0.0
  %1302 = vmatprep.subr.mxu0 0.0
  %1303 = vmatpush1.msra.mxu0 0.0
  %1304 = vmatprep.subr.mxu0 0.0
  %1305 = vmatpush1.msra.mxu0 0.0
  %1306 = vmatprep.subr.mxu0 0.0
  %1307 = vmatpush1.msra.mxu0 0.0
  %1308 = vmatprep.subr.mxu0 0.0
  %1309 = vmatpush1.msra.mxu0 0.0
  %1310 = vmatprep.subr.mxu0 0.0
  %1311 = vmatpush1.msra.mxu0 0.0
  %1312 = vmatprep.subr.mxu0 0.0
  %1313 = vmatpush1.msra.mxu0 0.0
  %1314 = vmatprep.subr.mxu0 0.0
  %1315 = vmatpush1.msra.mxu0 0.0
  %1316 = vmatprep.subr.mxu0 0.0
  %1317 = vmatpush1.msra.mxu0 0.0
  %1318 = vmatprep.subr.mxu0 0.0
  %1319 = vmatpush1.msra.mxu0 0.0
  %1320 = vmatprep.subr.mxu0 0.0
  %1321 = vmatpush1.msra.mxu0 0.0
  %1322 = vmatprep.subr.mxu0 0.0
  %1323 = vmatpush1.msra.mxu0 0.0
  %1324 = vmatprep.subr.mxu0 0.0
  %1325 = vmatpush1.msra.mxu0 0.0
  %1326 = vmatprep.subr.mxu0 0.0
  %1327 = vmatpush1.msra.mxu0 0.0
  %1328 = vmatprep.subr.mxu0 0.0
  %1329 = vmatpush1.msra.mxu0 0.0
  %1330 = vmatprep.subr.mxu0 0.0
  %1331 = vmatpush1.msra.mxu0 0.0
  %1332 = vmatprep.subr.mxu0 0.0
  %1333 = vmatpush1.msra.mxu0 0.0
  %1334 = vmatprep.subr.mxu0 0.0
  %1335 = vmatpush1.msra.mxu0 0.0
  %1336 = vmatprep.subr.mxu0 0.0
  %1337 = vmatpush1.msra.mxu0 0.0
  %1338 = vmatprep.subr.mxu0 0.0
  %1339 = vmatpush1.msra.mxu0 0.0
  %1340 = vmatprep.subr.mxu0 0.0
  %1341 = vmatpush1.msra.mxu0 0.0
  %1342 = vmatprep.subr.mxu0 0.0
  %1343 = vmatpush1.msra.mxu0 0.0
  %1344 = vmatprep.subr.mxu0 0.0
  %1345 = vmatpush1.msra.mxu0 0.0
  %1346 = vmatprep.mubr.f32.mxu0 0.0
  %1347 = vmatmul.mubr.f32.gmra.mrb[0].mxu0 %v1280
  %v1348 = vpop.f32.mrb[0].mxu0
  %v1349 = vadd.f32 0.0, %v1348
  %v1350 = vpop.f32.mrb[0].mxu0
  %1351 = vdwg.mxu0
  %s1352 = scalar_lea.vmem %s2, 64
  %v1353 = vld [vmem:[%s1352] sm:$0xff]
  %v1355 = vsel %vm196, %v1349, 0
  %1357 = vmatprep.subr.mxu0 0.0
  %1358 = vmatpush1.msra.mxu0 %v1353
  %1359 = vmatprep.subr.mxu0 0.0
  %1360 = vmatpush1.msra.mxu0 0.0
  %1361 = vmatprep.subr.mxu0 0.0
  %1362 = vmatpush1.msra.mxu0 0.0
  %1363 = vmatprep.subr.mxu0 0.0
  %1364 = vmatpush1.msra.mxu0 0.0
  %1365 = vmatprep.subr.mxu0 0.0
  %1366 = vmatpush1.msra.mxu0 0.0
  %1367 = vmatprep.subr.mxu0 0.0
  %1368 = vmatpush1.msra.mxu0 0.0
  %1369 = vmatprep.subr.mxu0 0.0
  %1370 = vmatpush1.msra.mxu0 0.0
  %1371 = vmatprep.subr.mxu0 0.0
  %1372 = vmatpush1.msra.mxu0 0.0
  %1373 = vmatprep.subr.mxu0 0.0
  %1374 = vmatpush1.msra.mxu0 0.0
  %1375 = vmatprep.subr.mxu0 0.0
  %1376 = vmatpush1.msra.mxu0 0.0
  %1377 = vmatprep.subr.mxu0 0.0
  %1378 = vmatpush1.msra.mxu0 0.0
  %1379 = vmatprep.subr.mxu0 0.0
  %1380 = vmatpush1.msra.mxu0 0.0
  %1381 = vmatprep.subr.mxu0 0.0
  %1382 = vmatpush1.msra.mxu0 0.0
  %1383 = vmatprep.subr.mxu0 0.0
  %1384 = vmatpush1.msra.mxu0 0.0
  %1385 = vmatprep.subr.mxu0 0.0
  %1386 = vmatpush1.msra.mxu0 0.0
  %1387 = vmatprep.subr.mxu0 0.0
  %1388 = vmatpush1.msra.mxu0 0.0
  %1389 = vmatprep.subr.mxu0 0.0
  %1390 = vmatpush1.msra.mxu0 0.0
  %1391 = vmatprep.subr.mxu0 0.0
  %1392 = vmatpush1.msra.mxu0 0.0
  %1393 = vmatprep.subr.mxu0 0.0
  %1394 = vmatpush1.msra.mxu0 0.0
  %1395 = vmatprep.subr.mxu0 0.0
  %1396 = vmatpush1.msra.mxu0 0.0
  %1397 = vmatprep.subr.mxu0 0.0
  %1398 = vmatpush1.msra.mxu0 0.0
  %1399 = vmatprep.subr.mxu0 0.0
  %1400 = vmatpush1.msra.mxu0 0.0
  %1401 = vmatprep.subr.mxu0 0.0
  %1402 = vmatpush1.msra.mxu0 0.0
  %1403 = vmatprep.subr.mxu0 0.0
  %1404 = vmatpush1.msra.mxu0 0.0
  %1405 = vmatprep.subr.mxu0 0.0
  %1406 = vmatpush1.msra.mxu0 0.0
  %1407 = vmatprep.subr.mxu0 0.0
  %1408 = vmatpush1.msra.mxu0 0.0
  %1409 = vmatprep.subr.mxu0 0.0
  %1410 = vmatpush1.msra.mxu0 0.0
  %1411 = vmatprep.subr.mxu0 0.0
  %1412 = vmatpush1.msra.mxu0 0.0
  %1413 = vmatprep.subr.mxu0 0.0
  %1414 = vmatpush1.msra.mxu0 0.0
  %1415 = vmatprep.subr.mxu0 0.0
  %1416 = vmatpush1.msra.mxu0 0.0
  %1417 = vmatprep.subr.mxu0 0.0
  %1418 = vmatpush1.msra.mxu0 0.0
  %1419 = vmatprep.subr.mxu0 0.0
  %1420 = vmatpush1.msra.mxu0 0.0
  %1421 = vmatprep.mubr.f32.mxu0 0.0
  %1422 = vmatmul.mubr.f32.gmra.mrb[0].mxu0 %v1355
  %v1423 = vpop.f32.mrb[0].mxu0
  %v1424 = vadd.f32 0.0, %v1423
  %v1425 = vpop.f32.mrb[0].mxu0
  %1426 = vdwg.mxu0
  %v1427 = vadd.f32 %v1272, %v1424
  %v1428 = vlaneseq
  %v1429 = vshrl.u32 %v1428, 7
  %v1430 = vsub.s32 0, %v1429
  %v1431 = vrot.slane %v27, %v1430
  %v1432 = vadd.f32 %v1427, %v1431
  %v1433 = vmax.f32 %v1432, 0.0
  %v1434 = vld [vmem:[%s3] sm:$0xff]
  %v1435 = vld [vmem:[%s3 + $0x8] sm:$0xff]
  %v1436 = vld [vmem:[%s3 + $0x10] sm:$0xff]
  %v1437 = vld [vmem:[%s3 + $0x18] sm:$0xff]
  %v1438 = vlaneseq
  %v1439 = vshrl.u32 %v1438, 7
  %v1440 = vsub.s32 1, %v1439
  %v1441 = vrot.slane %v27, %v1440
  %vm1442 = vcmask 261120
  %v1444 = vsel %vm1442, %v1433, 0
  %1446 = vmatprep.subr.mxu0 0.0
  %1447 = vmatpush1.msra.mxu0 %v1434
  %1448 = vmatprep.subr.mxu0 0.0
  %1449 = vmatpush1.msra.mxu0 %v1435
  %1450 = vmatprep.subr.mxu0 0.0
  %1451 = vmatpush1.msra.mxu0 %v1436
  %1452 = vmatprep.subr.mxu0 0.0
  %1453 = vmatpush1.msra.mxu0 %v1437
  %1454 = vmatprep.subr.mxu0 0.0
  %1455 = vmatpush1.msra.mxu0 0.0
  %1456 = vmatprep.subr.mxu0 0.0
  %1457 = vmatpush1.msra.mxu0 0.0
  %1458 = vmatprep.subr.mxu0 0.0
  %1459 = vmatpush1.msra.mxu0 0.0
  %1460 = vmatprep.subr.mxu0 0.0
  %1461 = vmatpush1.msra.mxu0 0.0
  %1462 = vmatprep.subr.mxu0 0.0
  %1463 = vmatpush1.msra.mxu0 0.0
  %1464 = vmatprep.subr.mxu0 0.0
  %1465 = vmatpush1.msra.mxu0 0.0
  %1466 = vmatprep.subr.mxu0 0.0
  %1467 = vmatpush1.msra.mxu0 0.0
  %1468 = vmatprep.subr.mxu0 0.0
  %1469 = vmatpush1.msra.mxu0 0.0
  %1470 = vmatprep.subr.mxu0 0.0
  %1471 = vmatpush1.msra.mxu0 0.0
  %1472 = vmatprep.subr.mxu0 0.0
  %1473 = vmatpush1.msra.mxu0 0.0
  %1474 = vmatprep.subr.mxu0 0.0
  %1475 = vmatpush1.msra.mxu0 0.0
  %1476 = vmatprep.subr.mxu0 0.0
  %1477 = vmatpush1.msra.mxu0 0.0
  %1478 = vmatprep.subr.mxu0 0.0
  %1479 = vmatpush1.msra.mxu0 0.0
  %1480 = vmatprep.subr.mxu0 0.0
  %1481 = vmatpush1.msra.mxu0 0.0
  %1482 = vmatprep.subr.mxu0 0.0
  %1483 = vmatpush1.msra.mxu0 0.0
  %1484 = vmatprep.subr.mxu0 0.0
  %1485 = vmatpush1.msra.mxu0 0.0
  %1486 = vmatprep.subr.mxu0 0.0
  %1487 = vmatpush1.msra.mxu0 0.0
  %1488 = vmatprep.subr.mxu0 0.0
  %1489 = vmatpush1.msra.mxu0 0.0
  %1490 = vmatprep.subr.mxu0 0.0
  %1491 = vmatpush1.msra.mxu0 0.0
  %1492 = vmatprep.subr.mxu0 0.0
  %1493 = vmatpush1.msra.mxu0 0.0
  %1494 = vmatprep.subr.mxu0 0.0
  %1495 = vmatpush1.msra.mxu0 0.0
  %1496 = vmatprep.subr.mxu0 0.0
  %1497 = vmatpush1.msra.mxu0 0.0
  %1498 = vmatprep.subr.mxu0 0.0
  %1499 = vmatpush1.msra.mxu0 0.0
  %1500 = vmatprep.subr.mxu0 0.0
  %1501 = vmatpush1.msra.mxu0 0.0
  %1502 = vmatprep.subr.mxu0 0.0
  %1503 = vmatpush1.msra.mxu0 0.0
  %1504 = vmatprep.subr.mxu0 0.0
  %1505 = vmatpush1.msra.mxu0 0.0
  %1506 = vmatprep.subr.mxu0 0.0
  %1507 = vmatpush1.msra.mxu0 0.0
  %1508 = vmatprep.subr.mxu0 0.0
  %1509 = vmatpush1.msra.mxu0 0.0
  %1510 = vmatprep.mubr.f32.mxu0 0.0
  %1511 = vmatmul.mubr.f32.gmra.mrb[0].mxu0 %v1444
  %v1512 = vpop.f32.mrb[0].mxu0
  %v1513 = vadd.f32 %v1441, %v1512
  %v1514 = vpop.f32.mrb[0].mxu0
  %1515 = vdwg.mxu0
  %v1516 = vmax.f32 %v1513, 0.0
  %v1517 = vld [vmem:[%s4] sm:$0x1]
  %v1519 = vlaneseq
  %v1520 = vshrl.u32 %v1519, 7
  %v1521 = vsub.s32 0, %v1520
  %v1522 = vrot.slane %v1517, %v1521
  %v1524 = vmul.f32 %v1516, %v1522
  %vm1525 = vcmask 130048
  %v1526 = vsel %vm1525, %v1524, 0.0
  %1527 = vadd.xlane.f32.xlu0 %v1526
  %v1528 = vpop.xlane.xlu0 %1527
  %v1529 = vlaneseq
  %v1530 = vshrl.u32 %v1529, 7
  %v1531 = vsub.s32 2, %v1530
  %v1532 = vrot.slane %v27, %v1531
  %v1533 = vadd.f32 %v1528, %v1532
  %1535 = vset.pattern.permute.xlu0 0
  %1536 = vperm.xlu0 %1535, %v1533
  %v1537 = vpop.permute.xlu0 %1536
  %1539 = vst [vmem:[%s6] sm:$0xff] %v1537
  // Predicated region
  $region26: #{linear_net_forward.1} parent=0 // pred_check
    _
  $region27: #{linear_net_forward.1} parent=0 // pred_check_branch
    %1541 = sbr.rel (0) target = $region29
  $region28: #{linear_net_forward.1} parent=0 // pred_region
    _
  $region29: #{linear_net_forward.1} parent=0 // pred_fallthru
    _
  // Predicated region
  $region30: #{linear_net_forward.1} parent=0 // pred_check
    _
  $region31: #{linear_net_forward.1} parent=0 // pred_check_branch
    %1543 = sbr.rel (0) target = $region33
  $region32: #{linear_net_forward.1} parent=0 // pred_region
    _
  $region33: #{linear_net_forward.1} parent=0 // pred_fallthru
    _

</llo_original>
